<compile_context>
chip_gen: v7x
topology: tpu7x:2x2x1
jax: 0.10.0
libtpu: 0.0.40
codegen_flags: <defaults>
</compile_context>

<pallas_src>
import functools

import jax
import jax.numpy as jnp
import numpy as np
from jax.experimental import pallas as pl
from jax.experimental.pallas import tpu as pltpu

# ----------------------------- Config (small) -----------------------------
BATCH = 2
SEQ = 8
VOCAB = 32
EMBED = 16
HIDDEN = 32
LAYERS = 2
IN_DIM = EMBED + HIDDEN  # LSTM layer-0 input size


# ------------------------------ Pallas kernel ------------------------------
def _lstm_cell(gates, c_prev, hidden):
    """PyTorch gate order: i, f, g, o.  gates: (B, 4H) -- one vreg at H=32.

    Two full-vreg EUP launches (sigmoid, tanh) instead of four per-slice launches;
    gate groups are then extracted with static lane slices.
    """
    sig = jax.nn.sigmoid(gates)
    tah = jnp.tanh(gates)
    i_g = sig[:, 0 * hidden:1 * hidden]
    f_g = sig[:, 1 * hidden:2 * hidden]
    g_g = tah[:, 2 * hidden:3 * hidden]
    o_g = sig[:, 3 * hidden:4 * hidden]
    c_new = f_g * c_prev + i_g * g_g
    h_new = o_g * jnp.tanh(c_new)
    return h_new, c_new


def _decoder_kernel(num_layers, seq, batch, hidden, in_dim, *refs):
    """refs = (x_ref, layer_slab_ref * L, proj_slab_ref, out_ref, g0_scr, htop_scr).

    layer slab l rows: [0:in_l]       Wih_l^T       (in_l, 4H)
                       [in_l:in_l+H]  Whh_l^T       (H, 4H)     (contiguous below Wih^T)
                       [in_l+H]       bih_l + bhh_l (1, 4H)
    proj slab rows:    [0:H]          Wp^T          (H, V)
                       [H]            bp            (1, V)
    """
    x_ref = refs[0]
    layer_refs = refs[1:1 + num_layers]
    proj_ref = refs[1 + num_layers]
    out_ref = refs[2 + num_layers]
    g0_ref = refs[3 + num_layers]      # VMEM scratch (S*B, 4H): hoisted layer-0 input gates
    htop_ref = refs[4 + num_layers]    # VMEM scratch (S*B, H):  top-layer h per step

    # ---- hoisted, time-independent layer-0 input projection (bias added exactly once) ----
    wih0 = layer_refs[0][0:in_dim, :]                                   # (in_dim, 4H)
    b0 = layer_refs[0][in_dim + hidden:in_dim + hidden + 1, :]          # (1, 4H)
    g0_ref[...] = jnp.dot(x_ref[...], wih0,
                          preferred_element_type=jnp.float32) + b0      # (S*B, 4H)

    # ---- hoisted bias broadcasts for layers l>0 (broadcast_in_dim is not CSE'd in a loop) ----
    bias_b = [None] * num_layers
    for l in range(1, num_layers):
        bias_b[l] = jnp.broadcast_to(
            layer_refs[l][2 * hidden:2 * hidden + 1, :], (batch, 4 * hidden))

    h = [jnp.zeros((batch, hidden), jnp.float32) for _ in range(num_layers)]
    c = [jnp.zeros((batch, hidden), jnp.float32) for _ in range(num_layers)]

    # ---- recurrence: fully unrolled at trace time (serial in time, as it must be) ----
    for t in range(seq):
        # layer 0: only the recurrent dot sits on the serial chain; the input-gate read is a
        # small independent vld from scratch.
        whh0 = layer_refs[0][in_dim:in_dim + hidden, :]                 # ref-slice at use site
        gates = g0_ref[t * batch:(t + 1) * batch, :] + jnp.dot(
            h[0], whh0, preferred_element_type=jnp.float32)
        h[0], c[0] = _lstm_cell(gates, c[0], hidden)
        x_t = h[0]

        # layers l>0: ONE fused dot of the lane-concat [x_t, h[l]] against the contiguous
        # stacked [Wih^T; Whh^T] slab view, plus the hoisted bias.
        for l in range(1, num_layers):
            w_l = layer_refs[l][0:2 * hidden, :]                        # (2H, 4H) contiguous
            xh = jnp.concatenate([x_t, h[l]], axis=1)                   # (B, 2H) lane concat
            gates = jnp.dot(xh, w_l, preferred_element_type=jnp.float32) + bias_b[l]
            h[l], c[l] = _lstm_cell(gates, c[l], hidden)
            x_t = h[l]

        # store this step's top-layer h; overlaps with the next step's MXU work.
        htop_ref[t * batch:(t + 1) * batch, :] = x_t

    # ---- batched epilogue: one projection, one softmax, one store ----
    h_all = htop_ref[...]                                               # (S*B, H)
    wp = proj_ref[0:hidden, :]                                          # (H, V)
    bp = proj_ref[hidden:hidden + 1, :]                                 # (1, V)
    logits = jnp.dot(h_all, wp, preferred_element_type=jnp.float32) + bp

    m = jnp.max(logits, axis=-1, keepdims=True)
    e = jnp.exp(logits - m)
    s = jnp.sum(e, axis=-1, keepdims=True)
    r = pl.reciprocal(s, approx=True)                                   # EUP slot (near free)
    r = r * (2.0 - s * r)                                               # one Newton step -> f32
    out_ref[...] = e * r


# ------------------------------ Host-side glue ------------------------------
def pack_lstm_layer(wih, whh, bih, bhh):
    """wih: (4H, in_l), whh: (4H, H), biases: (4H,) -> (in_l + H + 1, 4H) f32 slab."""
    return jnp.concatenate(
        [wih.T, whh.T, (bih + bhh).reshape(1, -1)], axis=0).astype(jnp.float32)


def pack_projection(wp, bp):
    """wp: (V, H), bp: (V,) -> (H + 1, V) f32 slab."""
    return jnp.concatenate([wp.T, bp.reshape(1, -1)], axis=0).astype(jnp.float32)


def decoder_pallas(x_seq, layer_slabs, proj_slab):
    """x_seq: (SEQ, BATCH, IN_DIM) f32 time-major input.  Returns (SEQ, BATCH, VOCAB) softmax."""
    x_flat = x_seq.reshape(SEQ * BATCH, IN_DIM)   # row t*B + b == (t, b): matches kernel layout
    kernel = functools.partial(_decoder_kernel, LAYERS, SEQ, BATCH, HIDDEN, IN_DIM)
    out = pl.pallas_call(
        kernel,
        out_shape=jax.ShapeDtypeStruct((SEQ * BATCH, VOCAB), jnp.float32),
        scratch_shapes=[
            pltpu.VMEM((SEQ * BATCH, 4 * HIDDEN), jnp.float32),   # hoisted layer-0 input gates
            pltpu.VMEM((SEQ * BATCH, HIDDEN), jnp.float32),       # top-layer h slab
        ],
        # No grid: whole problem is VMEM-resident in one invocation; the recurrence is strictly
        # serial so there is nothing to megacore-parallelize and nothing to pipeline.
    )(x_flat, *layer_slabs, proj_slab)
    return out.reshape(SEQ, BATCH, VOCAB)         # free metadata reshape in XLA


# ----------------------------- Pure-JAX reference -----------------------------
def decoder_reference(x_seq, raw_layers, wp, bp):
    h = [jnp.zeros((BATCH, HIDDEN), jnp.float32) for _ in range(LAYERS)]
    c = [jnp.zeros((BATCH, HIDDEN), jnp.float32) for _ in range(LAYERS)]
    outs = []
    for t in range(SEQ):
        x = x_seq[t]
        for l, (wih, whh, bih, bhh) in enumerate(raw_layers):
            gates = x @ wih.T + bih + h[l] @ whh.T + bhh
            i_g = jax.nn.sigmoid(gates[:, 0 * HIDDEN:1 * HIDDEN])
            f_g = jax.nn.sigmoid(gates[:, 1 * HIDDEN:2 * HIDDEN])
            g_g = jnp.tanh(gates[:, 2 * HIDDEN:3 * HIDDEN])
            o_g = jax.nn.sigmoid(gates[:, 3 * HIDDEN:4 * HIDDEN])
            c[l] = f_g * c[l] + i_g * g_g
            h[l] = o_g * jnp.tanh(c[l])
            x = h[l]
        logits = x @ wp.T + bp
        outs.append(jax.nn.softmax(logits, axis=-1))
    return jnp.stack(outs, axis=0)


# ----------------------------------- main -----------------------------------
if __name__ == "__main__":
    key = jax.random.PRNGKey(0)
    keys = jax.random.split(key, 16)

    # Deterministic "checkpoint-free" parameter init (shapes match nn.Embedding / nn.LSTM / nn.Linear)
    k = 1.0 / np.sqrt(HIDDEN)
    embedding = jax.random.normal(keys[0], (VOCAB, EMBED), jnp.float32) * 0.1

    raw_layers = []
    for l in range(LAYERS):
        in_l = IN_DIM if l == 0 else HIDDEN
        wih = jax.random.uniform(keys[1 + 4 * l], (4 * HIDDEN, in_l), jnp.float32, -k, k)
        whh = jax.random.uniform(keys[2 + 4 * l], (4 * HIDDEN, HIDDEN), jnp.float32, -k, k)
        bih = jax.random.uniform(keys[3 + 4 * l], (4 * HIDDEN,), jnp.float32, -k, k)
        bhh = jax.random.uniform(keys[4 + 4 * l], (4 * HIDDEN,), jnp.float32, -k, k)
        raw_layers.append((wih, whh, bih, bhh))

    wp = jax.random.uniform(keys[9], (VOCAB, HIDDEN), jnp.float32, -k, k)
    bp = jax.random.uniform(keys[10], (VOCAB,), jnp.float32, -k, k)

    # Pre-packed weight slabs for the kernel (one-time wrapper glue).
    layer_slabs = [pack_lstm_layer(*p) for p in raw_layers]
    proj_slab = pack_projection(wp, bp)

    # Inputs: token ids (batch, seq) and encoder_outputs (batch, hidden)
    input_sentences = jax.random.randint(keys[11], (BATCH, SEQ), 0, VOCAB)
    encoder_outputs = jax.random.normal(keys[12], (BATCH, HIDDEN), jnp.float32)

    # Glue (mirrors the PyTorch forward): embed -> permute to time-major -> concat encoder_outputs per step
    embedded = jnp.take(embedding, input_sentences, axis=0)      # (B, S, E)
    embedded = jnp.transpose(embedded, (1, 0, 2))                # (S, B, E)
    enc_b = jnp.broadcast_to(encoder_outputs[None], (SEQ, BATCH, HIDDEN))
    x_seq = jnp.concatenate([embedded, enc_b], axis=-1)          # (S, B, E+H)

    dist = decoder_pallas(x_seq, layer_slabs, proj_slab)
    dist = jax.block_until_ready(dist)

    ref = decoder_reference(x_seq, raw_layers, wp, bp)
    np.testing.assert_allclose(np.asarray(dist), np.asarray(ref), rtol=1e-4, atol=1e-5)
    assert dist.shape == (SEQ, BATCH, VOCAB)

    print("KERNEL_OK")
</pallas_src>

<mosaic_0001>
module attributes {stable_mosaic.version = 11 : i64} {
  func.func @_decoder_kernel(%arg0: memref<16x48xf32, #tpu.memory_space<vmem>>, %arg1: memref<81x128xf32, #tpu.memory_space<vmem>>, %arg2: memref<65x128xf32, #tpu.memory_space<vmem>>, %arg3: memref<33x32xf32, #tpu.memory_space<vmem>>, %arg4: memref<16x32xf32, #tpu.memory_space<vmem>>, %arg5: memref<16x128xf32, #tpu.memory_space<vmem>>, %arg6: memref<16x32xf32, #tpu.memory_space<vmem>>) attributes {dimension_semantics = [], scalar_prefetch = 0 : i64, scratch_operands = 2 : i64, tpu.core_type = #tpu.core_type<tc>} {
    %c0 = arith.constant 0 : index
    %c0_0 = arith.constant 0 : index
    %0 = vector.load %arg1[%c0, %c0_0] : memref<81x128xf32, #tpu.memory_space<vmem>>, vector<48x128xf32>
    %c80 = arith.constant 80 : index
    %c0_1 = arith.constant 0 : index
    %1 = vector.load %arg1[%c80, %c0_1] : memref<81x128xf32, #tpu.memory_space<vmem>>, vector<1x128xf32>
    %c0_2 = arith.constant 0 : index
    %c0_3 = arith.constant 0 : index
    %2 = vector.load %arg0[%c0_2, %c0_3] : memref<16x48xf32, #tpu.memory_space<vmem>>, vector<16x48xf32>
    %cst = arith.constant dense<0.000000e+00> : vector<16x128xf32>
    %3 = tpu.matmul %2, %0, %cst {dimension_numbers = #tpu.dot_dimension_numbers<[1], [0], [0], [1], [0, 0, 1, 1], [], []>} : vector<16x48xf32>, vector<48x128xf32>, vector<16x128xf32> -> vector<16x128xf32>
    %4 = vector.broadcast %1 : vector<1x128xf32> to vector<16x128xf32>
    %5 = arith.addf %3, %4 : vector<16x128xf32>
    %c0_4 = arith.constant 0 : index
    %c0_5 = arith.constant 0 : index
    %6 = vector.load %arg5[%c0_4, %c0_5] : memref<16x128xf32, #tpu.memory_space<vmem>>, vector<16x128xf32>
    tpu.vector_store %arg5[%c0_4, %c0_5], %5 {strides = array<i32>} : memref<16x128xf32, #tpu.memory_space<vmem>>, vector<16x128xf32>,
    %c64 = arith.constant 64 : index
    %c0_6 = arith.constant 0 : index
    %7 = vector.load %arg2[%c64, %c0_6] : memref<65x128xf32, #tpu.memory_space<vmem>>, vector<1x128xf32>
    %8 = vector.shape_cast %7 : vector<1x128xf32> to vector<1x128xf32>
    %9 = vector.broadcast %8 : vector<1x128xf32> to vector<2x128xf32>
    %cst_7 = arith.constant 0.000000e+00 : f32
    %10 = vector.broadcast %cst_7 : f32 to vector<2x32xf32>
    %cst_8 = arith.constant 0.000000e+00 : f32
    %11 = vector.broadcast %cst_8 : f32 to vector<2x32xf32>
    %cst_9 = arith.constant 0.000000e+00 : f32
    %12 = vector.broadcast %cst_9 : f32 to vector<2x32xf32>
    %cst_10 = arith.constant 0.000000e+00 : f32
    %13 = vector.broadcast %cst_10 : f32 to vector<2x32xf32>
    %c48 = arith.constant 48 : index
    %c0_11 = arith.constant 0 : index
    %14 = vector.load %arg1[%c48, %c0_11] : memref<81x128xf32, #tpu.memory_space<vmem>>, vector<32x128xf32>
    %c0_12 = arith.constant 0 : index
    %c0_13 = arith.constant 0 : index
    %15 = vector.load %arg5[%c0_12, %c0_13] : memref<16x128xf32, #tpu.memory_space<vmem>>, vector<2x128xf32>
    %cst_14 = arith.constant dense<0.000000e+00> : vector<2x128xf32>
    %16 = tpu.matmul %10, %14, %cst_14 {dimension_numbers = #tpu.dot_dimension_numbers<[1], [0], [0], [1], [0, 0, 1, 1], [], []>} : vector<2x32xf32>, vector<32x128xf32>, vector<2x128xf32> -> vector<2x128xf32>
    %17 = arith.addf %15, %16 : vector<2x128xf32>
    %18 = arith.negf %17 : vector<2x128xf32>
    %19 = math.exp %18 : vector<2x128xf32>
    %cst_15 = arith.constant 1.000000e+00 : f32
    %20 = vector.broadcast %cst_15 : f32 to vector<2x128xf32>
    %21 = arith.addf %20, %19 : vector<2x128xf32>
    %22 = arith.divf %20, %21 : vector<2x128xf32>
    %23 = math.tanh %17 : vector<2x128xf32>
    %24 = vector.extract_strided_slice %22 {offsets = [0, 0], sizes = [2, 32], strides = [1, 1]} : vector<2x128xf32> to vector<2x32xf32>
    %25 = vector.extract_strided_slice %22 {offsets = [0, 32], sizes = [2, 32], strides = [1, 1]} : vector<2x128xf32> to vector<2x32xf32>
    %26 = vector.extract_strided_slice %23 {offsets = [0, 64], sizes = [2, 32], strides = [1, 1]} : vector<2x128xf32> to vector<2x32xf32>
    %27 = vector.extract_strided_slice %22 {offsets = [0, 96], sizes = [2, 32], strides = [1, 1]} : vector<2x128xf32> to vector<2x32xf32>
    %28 = arith.mulf %25, %12 : vector<2x32xf32>
    %29 = arith.mulf %24, %26 : vector<2x32xf32>
    %30 = arith.addf %28, %29 : vector<2x32xf32>
    %31 = math.tanh %30 : vector<2x32xf32>
    %32 = arith.mulf %27, %31 : vector<2x32xf32>
    %c0_16 = arith.constant 0 : index
    %c0_17 = arith.constant 0 : index
    %33 = vector.load %arg2[%c0_16, %c0_17] : memref<65x128xf32, #tpu.memory_space<vmem>>, vector<64x128xf32>
    %34 = tpu.concatenate %32, %11 in 1 : vector<2x32xf32>, vector<2x32xf32> -> vector<2x64xf32>
    %cst_18 = arith.constant dense<0.000000e+00> : vector<2x128xf32>
    %35 = tpu.matmul %34, %33, %cst_18 {dimension_numbers = #tpu.dot_dimension_numbers<[1], [0], [0], [1], [0, 0, 1, 1], [], []>} : vector<2x64xf32>, vector<64x128xf32>, vector<2x128xf32> -> vector<2x128xf32>
    %36 = arith.addf %35, %9 : vector<2x128xf32>
    %37 = arith.negf %36 : vector<2x128xf32>
    %38 = math.exp %37 : vector<2x128xf32>
    %cst_19 = arith.constant 1.000000e+00 : f32
    %39 = vector.broadcast %cst_19 : f32 to vector<2x128xf32>
    %40 = arith.addf %39, %38 : vector<2x128xf32>
    %41 = arith.divf %39, %40 : vector<2x128xf32>
    %42 = math.tanh %36 : vector<2x128xf32>
    %43 = vector.extract_strided_slice %41 {offsets = [0, 0], sizes = [2, 32], strides = [1, 1]} : vector<2x128xf32> to vector<2x32xf32>
    %44 = vector.extract_strided_slice %41 {offsets = [0, 32], sizes = [2, 32], strides = [1, 1]} : vector<2x128xf32> to vector<2x32xf32>
    %45 = vector.extract_strided_slice %42 {offsets = [0, 64], sizes = [2, 32], strides = [1, 1]} : vector<2x128xf32> to vector<2x32xf32>
    %46 = vector.extract_strided_slice %41 {offsets = [0, 96], sizes = [2, 32], strides = [1, 1]} : vector<2x128xf32> to vector<2x32xf32>
    %47 = arith.mulf %44, %13 : vector<2x32xf32>
    %48 = arith.mulf %43, %45 : vector<2x32xf32>
    %49 = arith.addf %47, %48 : vector<2x32xf32>
    %50 = math.tanh %49 : vector<2x32xf32>
    %51 = arith.mulf %46, %50 : vector<2x32xf32>
    %c0_20 = arith.constant 0 : index
    %c0_21 = arith.constant 0 : index
    %52 = vector.load %arg6[%c0_20, %c0_21] : memref<16x32xf32, #tpu.memory_space<vmem>>, vector<2x32xf32>
    tpu.vector_store %arg6[%c0_20, %c0_21], %51 {strides = array<i32>} : memref<16x32xf32, #tpu.memory_space<vmem>>, vector<2x32xf32>,
    %c48_22 = arith.constant 48 : index
    %c0_23 = arith.constant 0 : index
    %53 = vector.load %arg1[%c48_22, %c0_23] : memref<81x128xf32, #tpu.memory_space<vmem>>, vector<32x128xf32>
    %c2 = arith.constant 2 : index
    %c0_24 = arith.constant 0 : index
    %54 = vector.load %arg5[%c2, %c0_24] : memref<16x128xf32, #tpu.memory_space<vmem>>, vector<2x128xf32>
    %cst_25 = arith.constant dense<0.000000e+00> : vector<2x128xf32>
    %55 = tpu.matmul %32, %53, %cst_25 {dimension_numbers = #tpu.dot_dimension_numbers<[1], [0], [0], [1], [0, 0, 1, 1], [], []>} : vector<2x32xf32>, vector<32x128xf32>, vector<2x128xf32> -> vector<2x128xf32>
    %56 = arith.addf %54, %55 : vector<2x128xf32>
    %57 = arith.negf %56 : vector<2x128xf32>
    %58 = math.exp %57 : vector<2x128xf32>
    %cst_26 = arith.constant 1.000000e+00 : f32
    %59 = vector.broadcast %cst_26 : f32 to vector<2x128xf32>
    %60 = arith.addf %59, %58 : vector<2x128xf32>
    %61 = arith.divf %59, %60 : vector<2x128xf32>
    %62 = math.tanh %56 : vector<2x128xf32>
    %63 = vector.extract_strided_slice %61 {offsets = [0, 0], sizes = [2, 32], strides = [1, 1]} : vector<2x128xf32> to vector<2x32xf32>
    %64 = vector.extract_strided_slice %61 {offsets = [0, 32], sizes = [2, 32], strides = [1, 1]} : vector<2x128xf32> to vector<2x32xf32>
    %65 = vector.extract_strided_slice %62 {offsets = [0, 64], sizes = [2, 32], strides = [1, 1]} : vector<2x128xf32> to vector<2x32xf32>
    %66 = vector.extract_strided_slice %61 {offsets = [0, 96], sizes = [2, 32], strides = [1, 1]} : vector<2x128xf32> to vector<2x32xf32>
    %67 = arith.mulf %64, %30 : vector<2x32xf32>
    %68 = arith.mulf %63, %65 : vector<2x32xf32>
    %69 = arith.addf %67, %68 : vector<2x32xf32>
    %70 = math.tanh %69 : vector<2x32xf32>
    %71 = arith.mulf %66, %70 : vector<2x32xf32>
    %c0_27 = arith.constant 0 : index
    %c0_28 = arith.constant 0 : index
    %72 = vector.load %arg2[%c0_27, %c0_28] : memref<65x128xf32, #tpu.memory_space<vmem>>, vector<64x128xf32>
    %73 = tpu.concatenate %71, %51 in 1 : vector<2x32xf32>, vector<2x32xf32> -> vector<2x64xf32>
    %cst_29 = arith.constant dense<0.000000e+00> : vector<2x128xf32>
    %74 = tpu.matmul %73, %72, %cst_29 {dimension_numbers = #tpu.dot_dimension_numbers<[1], [0], [0], [1], [0, 0, 1, 1], [], []>} : vector<2x64xf32>, vector<64x128xf32>, vector<2x128xf32> -> vector<2x128xf32>
    %75 = arith.addf %74, %9 : vector<2x128xf32>
    %76 = arith.negf %75 : vector<2x128xf32>
    %77 = math.exp %76 : vector<2x128xf32>
    %cst_30 = arith.constant 1.000000e+00 : f32
    %78 = vector.broadcast %cst_30 : f32 to vector<2x128xf32>
    %79 = arith.addf %78, %77 : vector<2x128xf32>
    %80 = arith.divf %78, %79 : vector<2x128xf32>
    %81 = math.tanh %75 : vector<2x128xf32>
    %82 = vector.extract_strided_slice %80 {offsets = [0, 0], sizes = [2, 32], strides = [1, 1]} : vector<2x128xf32> to vector<2x32xf32>
    %83 = vector.extract_strided_slice %80 {offsets = [0, 32], sizes = [2, 32], strides = [1, 1]} : vector<2x128xf32> to vector<2x32xf32>
    %84 = vector.extract_strided_slice %81 {offsets = [0, 64], sizes = [2, 32], strides = [1, 1]} : vector<2x128xf32> to vector<2x32xf32>
    %85 = vector.extract_strided_slice %80 {offsets = [0, 96], sizes = [2, 32], strides = [1, 1]} : vector<2x128xf32> to vector<2x32xf32>
    %86 = arith.mulf %83, %49 : vector<2x32xf32>
    %87 = arith.mulf %82, %84 : vector<2x32xf32>
    %88 = arith.addf %86, %87 : vector<2x32xf32>
    %89 = math.tanh %88 : vector<2x32xf32>
    %90 = arith.mulf %85, %89 : vector<2x32xf32>
    %c2_31 = arith.constant 2 : index
    %c0_32 = arith.constant 0 : index
    %91 = vector.load %arg6[%c2_31, %c0_32] : memref<16x32xf32, #tpu.memory_space<vmem>>, vector<2x32xf32>
    tpu.vector_store %arg6[%c2_31, %c0_32], %90 {strides = array<i32>} : memref<16x32xf32, #tpu.memory_space<vmem>>, vector<2x32xf32>,
    %c48_33 = arith.constant 48 : index
    %c0_34 = arith.constant 0 : index
    %92 = vector.load %arg1[%c48_33, %c0_34] : memref<81x128xf32, #tpu.memory_space<vmem>>, vector<32x128xf32>
    %c4 = arith.constant 4 : index
    %c0_35 = arith.constant 0 : index
    %93 = vector.load %arg5[%c4, %c0_35] : memref<16x128xf32, #tpu.memory_space<vmem>>, vector<2x128xf32>
    %cst_36 = arith.constant dense<0.000000e+00> : vector<2x128xf32>
    %94 = tpu.matmul %71, %92, %cst_36 {dimension_numbers = #tpu.dot_dimension_numbers<[1], [0], [0], [1], [0, 0, 1, 1], [], []>} : vector<2x32xf32>, vector<32x128xf32>, vector<2x128xf32> -> vector<2x128xf32>
    %95 = arith.addf %93, %94 : vector<2x128xf32>
    %96 = arith.negf %95 : vector<2x128xf32>
    %97 = math.exp %96 : vector<2x128xf32>
    %cst_37 = arith.constant 1.000000e+00 : f32
    %98 = vector.broadcast %cst_37 : f32 to vector<2x128xf32>
    %99 = arith.addf %98, %97 : vector<2x128xf32>
    %100 = arith.divf %98, %99 : vector<2x128xf32>
    %101 = math.tanh %95 : vector<2x128xf32>
    %102 = vector.extract_strided_slice %100 {offsets = [0, 0], sizes = [2, 32], strides = [1, 1]} : vector<2x128xf32> to vector<2x32xf32>
    %103 = vector.extract_strided_slice %100 {offsets = [0, 32], sizes = [2, 32], strides = [1, 1]} : vector<2x128xf32> to vector<2x32xf32>
    %104 = vector.extract_strided_slice %101 {offsets = [0, 64], sizes = [2, 32], strides = [1, 1]} : vector<2x128xf32> to vector<2x32xf32>
    %105 = vector.extract_strided_slice %100 {offsets = [0, 96], sizes = [2, 32], strides = [1, 1]} : vector<2x128xf32> to vector<2x32xf32>
    %106 = arith.mulf %103, %69 : vector<2x32xf32>
    %107 = arith.mulf %102, %104 : vector<2x32xf32>
    %108 = arith.addf %106, %107 : vector<2x32xf32>
    %109 = math.tanh %108 : vector<2x32xf32>
    %110 = arith.mulf %105, %109 : vector<2x32xf32>
    %c0_38 = arith.constant 0 : index
    %c0_39 = arith.constant 0 : index
    %111 = vector.load %arg2[%c0_38, %c0_39] : memref<65x128xf32, #tpu.memory_space<vmem>>, vector<64x128xf32>
    %112 = tpu.concatenate %110, %90 in 1 : vector<2x32xf32>, vector<2x32xf32> -> vector<2x64xf32>
    %cst_40 = arith.constant dense<0.000000e+00> : vector<2x128xf32>
    %113 = tpu.matmul %112, %111, %cst_40 {dimension_numbers = #tpu.dot_dimension_numbers<[1], [0], [0], [1], [0, 0, 1, 1], [], []>} : vector<2x64xf32>, vector<64x128xf32>, vector<2x128xf32> -> vector<2x128xf32>
    %114 = arith.addf %113, %9 : vector<2x128xf32>
    %115 = arith.negf %114 : vector<2x128xf32>
    %116 = math.exp %115 : vector<2x128xf32>
    %cst_41 = arith.constant 1.000000e+00 : f32
    %117 = vector.broadcast %cst_41 : f32 to vector<2x128xf32>
    %118 = arith.addf %117, %116 : vector<2x128xf32>
    %119 = arith.divf %117, %118 : vector<2x128xf32>
    %120 = math.tanh %114 : vector<2x128xf32>
    %121 = vector.extract_strided_slice %119 {offsets = [0, 0], sizes = [2, 32], strides = [1, 1]} : vector<2x128xf32> to vector<2x32xf32>
    %122 = vector.extract_strided_slice %119 {offsets = [0, 32], sizes = [2, 32], strides = [1, 1]} : vector<2x128xf32> to vector<2x32xf32>
    %123 = vector.extract_strided_slice %120 {offsets = [0, 64], sizes = [2, 32], strides = [1, 1]} : vector<2x128xf32> to vector<2x32xf32>
    %124 = vector.extract_strided_slice %119 {offsets = [0, 96], sizes = [2, 32], strides = [1, 1]} : vector<2x128xf32> to vector<2x32xf32>
    %125 = arith.mulf %122, %88 : vector<2x32xf32>
    %126 = arith.mulf %121, %123 : vector<2x32xf32>
    %127 = arith.addf %125, %126 : vector<2x32xf32>
    %128 = math.tanh %127 : vector<2x32xf32>
    %129 = arith.mulf %124, %128 : vector<2x32xf32>
    %c4_42 = arith.constant 4 : index
    %c0_43 = arith.constant 0 : index
    %130 = vector.load %arg6[%c4_42, %c0_43] : memref<16x32xf32, #tpu.memory_space<vmem>>, vector<2x32xf32>
    tpu.vector_store %arg6[%c4_42, %c0_43], %129 {strides = array<i32>} : memref<16x32xf32, #tpu.memory_space<vmem>>, vector<2x32xf32>,
    %c48_44 = arith.constant 48 : index
    %c0_45 = arith.constant 0 : index
    %131 = vector.load %arg1[%c48_44, %c0_45] : memref<81x128xf32, #tpu.memory_space<vmem>>, vector<32x128xf32>
    %c6 = arith.constant 6 : index
    %c0_46 = arith.constant 0 : index
    %132 = vector.load %arg5[%c6, %c0_46] : memref<16x128xf32, #tpu.memory_space<vmem>>, vector<2x128xf32>
    %cst_47 = arith.constant dense<0.000000e+00> : vector<2x128xf32>
    %133 = tpu.matmul %110, %131, %cst_47 {dimension_numbers = #tpu.dot_dimension_numbers<[1], [0], [0], [1], [0, 0, 1, 1], [], []>} : vector<2x32xf32>, vector<32x128xf32>, vector<2x128xf32> -> vector<2x128xf32>
    %134 = arith.addf %132, %133 : vector<2x128xf32>
    %135 = arith.negf %134 : vector<2x128xf32>
    %136 = math.exp %135 : vector<2x128xf32>
    %cst_48 = arith.constant 1.000000e+00 : f32
    %137 = vector.broadcast %cst_48 : f32 to vector<2x128xf32>
    %138 = arith.addf %137, %136 : vector<2x128xf32>
    %139 = arith.divf %137, %138 : vector<2x128xf32>
    %140 = math.tanh %134 : vector<2x128xf32>
    %141 = vector.extract_strided_slice %139 {offsets = [0, 0], sizes = [2, 32], strides = [1, 1]} : vector<2x128xf32> to vector<2x32xf32>
    %142 = vector.extract_strided_slice %139 {offsets = [0, 32], sizes = [2, 32], strides = [1, 1]} : vector<2x128xf32> to vector<2x32xf32>
    %143 = vector.extract_strided_slice %140 {offsets = [0, 64], sizes = [2, 32], strides = [1, 1]} : vector<2x128xf32> to vector<2x32xf32>
    %144 = vector.extract_strided_slice %139 {offsets = [0, 96], sizes = [2, 32], strides = [1, 1]} : vector<2x128xf32> to vector<2x32xf32>
    %145 = arith.mulf %142, %108 : vector<2x32xf32>
    %146 = arith.mulf %141, %143 : vector<2x32xf32>
    %147 = arith.addf %145, %146 : vector<2x32xf32>
    %148 = math.tanh %147 : vector<2x32xf32>
    %149 = arith.mulf %144, %148 : vector<2x32xf32>
    %c0_49 = arith.constant 0 : index
    %c0_50 = arith.constant 0 : index
    %150 = vector.load %arg2[%c0_49, %c0_50] : memref<65x128xf32, #tpu.memory_space<vmem>>, vector<64x128xf32>
    %151 = tpu.concatenate %149, %129 in 1 : vector<2x32xf32>, vector<2x32xf32> -> vector<2x64xf32>
    %cst_51 = arith.constant dense<0.000000e+00> : vector<2x128xf32>
    %152 = tpu.matmul %151, %150, %cst_51 {dimension_numbers = #tpu.dot_dimension_numbers<[1], [0], [0], [1], [0, 0, 1, 1], [], []>} : vector<2x64xf32>, vector<64x128xf32>, vector<2x128xf32> -> vector<2x128xf32>
    %153 = arith.addf %152, %9 : vector<2x128xf32>
    %154 = arith.negf %153 : vector<2x128xf32>
    %155 = math.exp %154 : vector<2x128xf32>
    %cst_52 = arith.constant 1.000000e+00 : f32
    %156 = vector.broadcast %cst_52 : f32 to vector<2x128xf32>
    %157 = arith.addf %156, %155 : vector<2x128xf32>
    %158 = arith.divf %156, %157 : vector<2x128xf32>
    %159 = math.tanh %153 : vector<2x128xf32>
    %160 = vector.extract_strided_slice %158 {offsets = [0, 0], sizes = [2, 32], strides = [1, 1]} : vector<2x128xf32> to vector<2x32xf32>
    %161 = vector.extract_strided_slice %158 {offsets = [0, 32], sizes = [2, 32], strides = [1, 1]} : vector<2x128xf32> to vector<2x32xf32>
    %162 = vector.extract_strided_slice %159 {offsets = [0, 64], sizes = [2, 32], strides = [1, 1]} : vector<2x128xf32> to vector<2x32xf32>
    %163 = vector.extract_strided_slice %158 {offsets = [0, 96], sizes = [2, 32], strides = [1, 1]} : vector<2x128xf32> to vector<2x32xf32>
    %164 = arith.mulf %161, %127 : vector<2x32xf32>
    %165 = arith.mulf %160, %162 : vector<2x32xf32>
    %166 = arith.addf %164, %165 : vector<2x32xf32>
    %167 = math.tanh %166 : vector<2x32xf32>
    %168 = arith.mulf %163, %167 : vector<2x32xf32>
    %c6_53 = arith.constant 6 : index
    %c0_54 = arith.constant 0 : index
    %169 = vector.load %arg6[%c6_53, %c0_54] : memref<16x32xf32, #tpu.memory_space<vmem>>, vector<2x32xf32>
    tpu.vector_store %arg6[%c6_53, %c0_54], %168 {strides = array<i32>} : memref<16x32xf32, #tpu.memory_space<vmem>>, vector<2x32xf32>,
    %c48_55 = arith.constant 48 : index
    %c0_56 = arith.constant 0 : index
    %170 = vector.load %arg1[%c48_55, %c0_56] : memref<81x128xf32, #tpu.memory_space<vmem>>, vector<32x128xf32>
    %c8 = arith.constant 8 : index
    %c0_57 = arith.constant 0 : index
    %171 = vector.load %arg5[%c8, %c0_57] : memref<16x128xf32, #tpu.memory_space<vmem>>, vector<2x128xf32>
    %cst_58 = arith.constant dense<0.000000e+00> : vector<2x128xf32>
    %172 = tpu.matmul %149, %170, %cst_58 {dimension_numbers = #tpu.dot_dimension_numbers<[1], [0], [0], [1], [0, 0, 1, 1], [], []>} : vector<2x32xf32>, vector<32x128xf32>, vector<2x128xf32> -> vector<2x128xf32>
    %173 = arith.addf %171, %172 : vector<2x128xf32>
    %174 = arith.negf %173 : vector<2x128xf32>
    %175 = math.exp %174 : vector<2x128xf32>
    %cst_59 = arith.constant 1.000000e+00 : f32
    %176 = vector.broadcast %cst_59 : f32 to vector<2x128xf32>
    %177 = arith.addf %176, %175 : vector<2x128xf32>
    %178 = arith.divf %176, %177 : vector<2x128xf32>
    %179 = math.tanh %173 : vector<2x128xf32>
    %180 = vector.extract_strided_slice %178 {offsets = [0, 0], sizes = [2, 32], strides = [1, 1]} : vector<2x128xf32> to vector<2x32xf32>
    %181 = vector.extract_strided_slice %178 {offsets = [0, 32], sizes = [2, 32], strides = [1, 1]} : vector<2x128xf32> to vector<2x32xf32>
    %182 = vector.extract_strided_slice %179 {offsets = [0, 64], sizes = [2, 32], strides = [1, 1]} : vector<2x128xf32> to vector<2x32xf32>
    %183 = vector.extract_strided_slice %178 {offsets = [0, 96], sizes = [2, 32], strides = [1, 1]} : vector<2x128xf32> to vector<2x32xf32>
    %184 = arith.mulf %181, %147 : vector<2x32xf32>
    %185 = arith.mulf %180, %182 : vector<2x32xf32>
    %186 = arith.addf %184, %185 : vector<2x32xf32>
    %187 = math.tanh %186 : vector<2x32xf32>
    %188 = arith.mulf %183, %187 : vector<2x32xf32>
    %c0_60 = arith.constant 0 : index
    %c0_61 = arith.constant 0 : index
    %189 = vector.load %arg2[%c0_60, %c0_61] : memref<65x128xf32, #tpu.memory_space<vmem>>, vector<64x128xf32>
    %190 = tpu.concatenate %188, %168 in 1 : vector<2x32xf32>, vector<2x32xf32> -> vector<2x64xf32>
    %cst_62 = arith.constant dense<0.000000e+00> : vector<2x128xf32>
    %191 = tpu.matmul %190, %189, %cst_62 {dimension_numbers = #tpu.dot_dimension_numbers<[1], [0], [0], [1], [0, 0, 1, 1], [], []>} : vector<2x64xf32>, vector<64x128xf32>, vector<2x128xf32> -> vector<2x128xf32>
    %192 = arith.addf %191, %9 : vector<2x128xf32>
    %193 = arith.negf %192 : vector<2x128xf32>
    %194 = math.exp %193 : vector<2x128xf32>
    %cst_63 = arith.constant 1.000000e+00 : f32
    %195 = vector.broadcast %cst_63 : f32 to vector<2x128xf32>
    %196 = arith.addf %195, %194 : vector<2x128xf32>
    %197 = arith.divf %195, %196 : vector<2x128xf32>
    %198 = math.tanh %192 : vector<2x128xf32>
    %199 = vector.extract_strided_slice %197 {offsets = [0, 0], sizes = [2, 32], strides = [1, 1]} : vector<2x128xf32> to vector<2x32xf32>
    %200 = vector.extract_strided_slice %197 {offsets = [0, 32], sizes = [2, 32], strides = [1, 1]} : vector<2x128xf32> to vector<2x32xf32>
    %201 = vector.extract_strided_slice %198 {offsets = [0, 64], sizes = [2, 32], strides = [1, 1]} : vector<2x128xf32> to vector<2x32xf32>
    %202 = vector.extract_strided_slice %197 {offsets = [0, 96], sizes = [2, 32], strides = [1, 1]} : vector<2x128xf32> to vector<2x32xf32>
    %203 = arith.mulf %200, %166 : vector<2x32xf32>
    %204 = arith.mulf %199, %201 : vector<2x32xf32>
    %205 = arith.addf %203, %204 : vector<2x32xf32>
    %206 = math.tanh %205 : vector<2x32xf32>
    %207 = arith.mulf %202, %206 : vector<2x32xf32>
    %c8_64 = arith.constant 8 : index
    %c0_65 = arith.constant 0 : index
    %208 = vector.load %arg6[%c8_64, %c0_65] : memref<16x32xf32, #tpu.memory_space<vmem>>, vector<2x32xf32>
    tpu.vector_store %arg6[%c8_64, %c0_65], %207 {strides = array<i32>} : memref<16x32xf32, #tpu.memory_space<vmem>>, vector<2x32xf32>,
    %c48_66 = arith.constant 48 : index
    %c0_67 = arith.constant 0 : index
    %209 = vector.load %arg1[%c48_66, %c0_67] : memref<81x128xf32, #tpu.memory_space<vmem>>, vector<32x128xf32>
    %c10 = arith.constant 10 : index
    %c0_68 = arith.constant 0 : index
    %210 = vector.load %arg5[%c10, %c0_68] : memref<16x128xf32, #tpu.memory_space<vmem>>, vector<2x128xf32>
    %cst_69 = arith.constant dense<0.000000e+00> : vector<2x128xf32>
    %211 = tpu.matmul %188, %209, %cst_69 {dimension_numbers = #tpu.dot_dimension_numbers<[1], [0], [0], [1], [0, 0, 1, 1], [], []>} : vector<2x32xf32>, vector<32x128xf32>, vector<2x128xf32> -> vector<2x128xf32>
    %212 = arith.addf %210, %211 : vector<2x128xf32>
    %213 = arith.negf %212 : vector<2x128xf32>
    %214 = math.exp %213 : vector<2x128xf32>
    %cst_70 = arith.constant 1.000000e+00 : f32
    %215 = vector.broadcast %cst_70 : f32 to vector<2x128xf32>
    %216 = arith.addf %215, %214 : vector<2x128xf32>
    %217 = arith.divf %215, %216 : vector<2x128xf32>
    %218 = math.tanh %212 : vector<2x128xf32>
    %219 = vector.extract_strided_slice %217 {offsets = [0, 0], sizes = [2, 32], strides = [1, 1]} : vector<2x128xf32> to vector<2x32xf32>
    %220 = vector.extract_strided_slice %217 {offsets = [0, 32], sizes = [2, 32], strides = [1, 1]} : vector<2x128xf32> to vector<2x32xf32>
    %221 = vector.extract_strided_slice %218 {offsets = [0, 64], sizes = [2, 32], strides = [1, 1]} : vector<2x128xf32> to vector<2x32xf32>
    %222 = vector.extract_strided_slice %217 {offsets = [0, 96], sizes = [2, 32], strides = [1, 1]} : vector<2x128xf32> to vector<2x32xf32>
    %223 = arith.mulf %220, %186 : vector<2x32xf32>
    %224 = arith.mulf %219, %221 : vector<2x32xf32>
    %225 = arith.addf %223, %224 : vector<2x32xf32>
    %226 = math.tanh %225 : vector<2x32xf32>
    %227 = arith.mulf %222, %226 : vector<2x32xf32>
    %c0_71 = arith.constant 0 : index
    %c0_72 = arith.constant 0 : index
    %228 = vector.load %arg2[%c0_71, %c0_72] : memref<65x128xf32, #tpu.memory_space<vmem>>, vector<64x128xf32>
    %229 = tpu.concatenate %227, %207 in 1 : vector<2x32xf32>, vector<2x32xf32> -> vector<2x64xf32>
    %cst_73 = arith.constant dense<0.000000e+00> : vector<2x128xf32>
    %230 = tpu.matmul %229, %228, %cst_73 {dimension_numbers = #tpu.dot_dimension_numbers<[1], [0], [0], [1], [0, 0, 1, 1], [], []>} : vector<2x64xf32>, vector<64x128xf32>, vector<2x128xf32> -> vector<2x128xf32>
    %231 = arith.addf %230, %9 : vector<2x128xf32>
    %232 = arith.negf %231 : vector<2x128xf32>
    %233 = math.exp %232 : vector<2x128xf32>
    %cst_74 = arith.constant 1.000000e+00 : f32
    %234 = vector.broadcast %cst_74 : f32 to vector<2x128xf32>
    %235 = arith.addf %234, %233 : vector<2x128xf32>
    %236 = arith.divf %234, %235 : vector<2x128xf32>
    %237 = math.tanh %231 : vector<2x128xf32>
    %238 = vector.extract_strided_slice %236 {offsets = [0, 0], sizes = [2, 32], strides = [1, 1]} : vector<2x128xf32> to vector<2x32xf32>
    %239 = vector.extract_strided_slice %236 {offsets = [0, 32], sizes = [2, 32], strides = [1, 1]} : vector<2x128xf32> to vector<2x32xf32>
    %240 = vector.extract_strided_slice %237 {offsets = [0, 64], sizes = [2, 32], strides = [1, 1]} : vector<2x128xf32> to vector<2x32xf32>
    %241 = vector.extract_strided_slice %236 {offsets = [0, 96], sizes = [2, 32], strides = [1, 1]} : vector<2x128xf32> to vector<2x32xf32>
    %242 = arith.mulf %239, %205 : vector<2x32xf32>
    %243 = arith.mulf %238, %240 : vector<2x32xf32>
    %244 = arith.addf %242, %243 : vector<2x32xf32>
    %245 = math.tanh %244 : vector<2x32xf32>
    %246 = arith.mulf %241, %245 : vector<2x32xf32>
    %c10_75 = arith.constant 10 : index
    %c0_76 = arith.constant 0 : index
    %247 = vector.load %arg6[%c10_75, %c0_76] : memref<16x32xf32, #tpu.memory_space<vmem>>, vector<2x32xf32>
    tpu.vector_store %arg6[%c10_75, %c0_76], %246 {strides = array<i32>} : memref<16x32xf32, #tpu.memory_space<vmem>>, vector<2x32xf32>,
    %c48_77 = arith.constant 48 : index
    %c0_78 = arith.constant 0 : index
    %248 = vector.load %arg1[%c48_77, %c0_78] : memref<81x128xf32, #tpu.memory_space<vmem>>, vector<32x128xf32>
    %c12 = arith.constant 12 : index
    %c0_79 = arith.constant 0 : index
    %249 = vector.load %arg5[%c12, %c0_79] : memref<16x128xf32, #tpu.memory_space<vmem>>, vector<2x128xf32>
    %cst_80 = arith.constant dense<0.000000e+00> : vector<2x128xf32>
    %250 = tpu.matmul %227, %248, %cst_80 {dimension_numbers = #tpu.dot_dimension_numbers<[1], [0], [0], [1], [0, 0, 1, 1], [], []>} : vector<2x32xf32>, vector<32x128xf32>, vector<2x128xf32> -> vector<2x128xf32>
    %251 = arith.addf %249, %250 : vector<2x128xf32>
    %252 = arith.negf %251 : vector<2x128xf32>
    %253 = math.exp %252 : vector<2x128xf32>
    %cst_81 = arith.constant 1.000000e+00 : f32
    %254 = vector.broadcast %cst_81 : f32 to vector<2x128xf32>
    %255 = arith.addf %254, %253 : vector<2x128xf32>
    %256 = arith.divf %254, %255 : vector<2x128xf32>
    %257 = math.tanh %251 : vector<2x128xf32>
    %258 = vector.extract_strided_slice %256 {offsets = [0, 0], sizes = [2, 32], strides = [1, 1]} : vector<2x128xf32> to vector<2x32xf32>
    %259 = vector.extract_strided_slice %256 {offsets = [0, 32], sizes = [2, 32], strides = [1, 1]} : vector<2x128xf32> to vector<2x32xf32>
    %260 = vector.extract_strided_slice %257 {offsets = [0, 64], sizes = [2, 32], strides = [1, 1]} : vector<2x128xf32> to vector<2x32xf32>
    %261 = vector.extract_strided_slice %256 {offsets = [0, 96], sizes = [2, 32], strides = [1, 1]} : vector<2x128xf32> to vector<2x32xf32>
    %262 = arith.mulf %259, %225 : vector<2x32xf32>
    %263 = arith.mulf %258, %260 : vector<2x32xf32>
    %264 = arith.addf %262, %263 : vector<2x32xf32>
    %265 = math.tanh %264 : vector<2x32xf32>
    %266 = arith.mulf %261, %265 : vector<2x32xf32>
    %c0_82 = arith.constant 0 : index
    %c0_83 = arith.constant 0 : index
    %267 = vector.load %arg2[%c0_82, %c0_83] : memref<65x128xf32, #tpu.memory_space<vmem>>, vector<64x128xf32>
    %268 = tpu.concatenate %266, %246 in 1 : vector<2x32xf32>, vector<2x32xf32> -> vector<2x64xf32>
    %cst_84 = arith.constant dense<0.000000e+00> : vector<2x128xf32>
    %269 = tpu.matmul %268, %267, %cst_84 {dimension_numbers = #tpu.dot_dimension_numbers<[1], [0], [0], [1], [0, 0, 1, 1], [], []>} : vector<2x64xf32>, vector<64x128xf32>, vector<2x128xf32> -> vector<2x128xf32>
    %270 = arith.addf %269, %9 : vector<2x128xf32>
    %271 = arith.negf %270 : vector<2x128xf32>
    %272 = math.exp %271 : vector<2x128xf32>
    %cst_85 = arith.constant 1.000000e+00 : f32
    %273 = vector.broadcast %cst_85 : f32 to vector<2x128xf32>
    %274 = arith.addf %273, %272 : vector<2x128xf32>
    %275 = arith.divf %273, %274 : vector<2x128xf32>
    %276 = math.tanh %270 : vector<2x128xf32>
    %277 = vector.extract_strided_slice %275 {offsets = [0, 0], sizes = [2, 32], strides = [1, 1]} : vector<2x128xf32> to vector<2x32xf32>
    %278 = vector.extract_strided_slice %275 {offsets = [0, 32], sizes = [2, 32], strides = [1, 1]} : vector<2x128xf32> to vector<2x32xf32>
    %279 = vector.extract_strided_slice %276 {offsets = [0, 64], sizes = [2, 32], strides = [1, 1]} : vector<2x128xf32> to vector<2x32xf32>
    %280 = vector.extract_strided_slice %275 {offsets = [0, 96], sizes = [2, 32], strides = [1, 1]} : vector<2x128xf32> to vector<2x32xf32>
    %281 = arith.mulf %278, %244 : vector<2x32xf32>
    %282 = arith.mulf %277, %279 : vector<2x32xf32>
    %283 = arith.addf %281, %282 : vector<2x32xf32>
    %284 = math.tanh %283 : vector<2x32xf32>
    %285 = arith.mulf %280, %284 : vector<2x32xf32>
    %c12_86 = arith.constant 12 : index
    %c0_87 = arith.constant 0 : index
    %286 = vector.load %arg6[%c12_86, %c0_87] : memref<16x32xf32, #tpu.memory_space<vmem>>, vector<2x32xf32>
    tpu.vector_store %arg6[%c12_86, %c0_87], %285 {strides = array<i32>} : memref<16x32xf32, #tpu.memory_space<vmem>>, vector<2x32xf32>,
    %c48_88 = arith.constant 48 : index
    %c0_89 = arith.constant 0 : index
    %287 = vector.load %arg1[%c48_88, %c0_89] : memref<81x128xf32, #tpu.memory_space<vmem>>, vector<32x128xf32>
    %c14 = arith.constant 14 : index
    %c0_90 = arith.constant 0 : index
    %288 = vector.load %arg5[%c14, %c0_90] : memref<16x128xf32, #tpu.memory_space<vmem>>, vector<2x128xf32>
    %cst_91 = arith.constant dense<0.000000e+00> : vector<2x128xf32>
    %289 = tpu.matmul %266, %287, %cst_91 {dimension_numbers = #tpu.dot_dimension_numbers<[1], [0], [0], [1], [0, 0, 1, 1], [], []>} : vector<2x32xf32>, vector<32x128xf32>, vector<2x128xf32> -> vector<2x128xf32>
    %290 = arith.addf %288, %289 : vector<2x128xf32>
    %291 = arith.negf %290 : vector<2x128xf32>
    %292 = math.exp %291 : vector<2x128xf32>
    %cst_92 = arith.constant 1.000000e+00 : f32
    %293 = vector.broadcast %cst_92 : f32 to vector<2x128xf32>
    %294 = arith.addf %293, %292 : vector<2x128xf32>
    %295 = arith.divf %293, %294 : vector<2x128xf32>
    %296 = math.tanh %290 : vector<2x128xf32>
    %297 = vector.extract_strided_slice %295 {offsets = [0, 0], sizes = [2, 32], strides = [1, 1]} : vector<2x128xf32> to vector<2x32xf32>
    %298 = vector.extract_strided_slice %295 {offsets = [0, 32], sizes = [2, 32], strides = [1, 1]} : vector<2x128xf32> to vector<2x32xf32>
    %299 = vector.extract_strided_slice %296 {offsets = [0, 64], sizes = [2, 32], strides = [1, 1]} : vector<2x128xf32> to vector<2x32xf32>
    %300 = vector.extract_strided_slice %295 {offsets = [0, 96], sizes = [2, 32], strides = [1, 1]} : vector<2x128xf32> to vector<2x32xf32>
    %301 = arith.mulf %298, %264 : vector<2x32xf32>
    %302 = arith.mulf %297, %299 : vector<2x32xf32>
    %303 = arith.addf %301, %302 : vector<2x32xf32>
    %304 = math.tanh %303 : vector<2x32xf32>
    %305 = arith.mulf %300, %304 : vector<2x32xf32>
    %c0_93 = arith.constant 0 : index
    %c0_94 = arith.constant 0 : index
    %306 = vector.load %arg2[%c0_93, %c0_94] : memref<65x128xf32, #tpu.memory_space<vmem>>, vector<64x128xf32>
    %307 = tpu.concatenate %305, %285 in 1 : vector<2x32xf32>, vector<2x32xf32> -> vector<2x64xf32>
    %cst_95 = arith.constant dense<0.000000e+00> : vector<2x128xf32>
    %308 = tpu.matmul %307, %306, %cst_95 {dimension_numbers = #tpu.dot_dimension_numbers<[1], [0], [0], [1], [0, 0, 1, 1], [], []>} : vector<2x64xf32>, vector<64x128xf32>, vector<2x128xf32> -> vector<2x128xf32>
    %309 = arith.addf %308, %9 : vector<2x128xf32>
    %310 = arith.negf %309 : vector<2x128xf32>
    %311 = math.exp %310 : vector<2x128xf32>
    %cst_96 = arith.constant 1.000000e+00 : f32
    %312 = vector.broadcast %cst_96 : f32 to vector<2x128xf32>
    %313 = arith.addf %312, %311 : vector<2x128xf32>
    %314 = arith.divf %312, %313 : vector<2x128xf32>
    %315 = math.tanh %309 : vector<2x128xf32>
    %316 = vector.extract_strided_slice %314 {offsets = [0, 0], sizes = [2, 32], strides = [1, 1]} : vector<2x128xf32> to vector<2x32xf32>
    %317 = vector.extract_strided_slice %314 {offsets = [0, 32], sizes = [2, 32], strides = [1, 1]} : vector<2x128xf32> to vector<2x32xf32>
    %318 = vector.extract_strided_slice %315 {offsets = [0, 64], sizes = [2, 32], strides = [1, 1]} : vector<2x128xf32> to vector<2x32xf32>
    %319 = vector.extract_strided_slice %314 {offsets = [0, 96], sizes = [2, 32], strides = [1, 1]} : vector<2x128xf32> to vector<2x32xf32>
    %320 = arith.mulf %317, %283 : vector<2x32xf32>
    %321 = arith.mulf %316, %318 : vector<2x32xf32>
    %322 = arith.addf %320, %321 : vector<2x32xf32>
    %323 = math.tanh %322 : vector<2x32xf32>
    %324 = arith.mulf %319, %323 : vector<2x32xf32>
    %c14_97 = arith.constant 14 : index
    %c0_98 = arith.constant 0 : index
    %325 = vector.load %arg6[%c14_97, %c0_98] : memref<16x32xf32, #tpu.memory_space<vmem>>, vector<2x32xf32>
    tpu.vector_store %arg6[%c14_97, %c0_98], %324 {strides = array<i32>} : memref<16x32xf32, #tpu.memory_space<vmem>>, vector<2x32xf32>,
    %c0_99 = arith.constant 0 : index
    %c0_100 = arith.constant 0 : index
    %326 = vector.load %arg6[%c0_99, %c0_100] : memref<16x32xf32, #tpu.memory_space<vmem>>, vector<16x32xf32>
    %c0_101 = arith.constant 0 : index
    %c0_102 = arith.constant 0 : index
    %327 = vector.load %arg3[%c0_101, %c0_102] : memref<33x32xf32, #tpu.memory_space<vmem>>, vector<32x32xf32>
    %c32 = arith.constant 32 : index
    %c0_103 = arith.constant 0 : index
    %328 = vector.load %arg3[%c32, %c0_103] : memref<33x32xf32, #tpu.memory_space<vmem>>, vector<1x32xf32>
    %cst_104 = arith.constant dense<0.000000e+00> : vector<16x32xf32>
    %329 = tpu.matmul %326, %327, %cst_104 {dimension_numbers = #tpu.dot_dimension_numbers<[1], [0], [0], [1], [0, 0, 1, 1], [], []>} : vector<16x32xf32>, vector<32x32xf32>, vector<16x32xf32> -> vector<16x32xf32>
    %330 = vector.broadcast %328 : vector<1x32xf32> to vector<16x32xf32>
    %331 = arith.addf %329, %330 : vector<16x32xf32>
    %cst_105 = arith.constant dense<0xFF800000> : vector<16xf32>
    %332 = vector.multi_reduction <maximumf>, %331, %cst_105 [1] : vector<16x32xf32> to vector<16xf32>
    %333 = vector.shape_cast %332 : vector<16xf32> to vector<16x1xf32>
    %334 = vector.broadcast %333 : vector<16x1xf32> to vector<16x32xf32>
    %335 = arith.subf %331, %334 : vector<16x32xf32>
    %336 = math.exp %335 : vector<16x32xf32>
    %cst_106 = arith.constant dense<0.000000e+00> : vector<16xf32>
    %337 = vector.multi_reduction <add>, %336, %cst_106 [1] : vector<16x32xf32> to vector<16xf32>
    %338 = vector.shape_cast %337 : vector<16xf32> to vector<16x1xf32>
    %339 = tpu.reciprocal %338 {approx = true} : vector<16x1xf32> -> vector<16x1xf32>
    %340 = arith.mulf %338, %339 : vector<16x1xf32>
    %cst_107 = arith.constant 2.000000e+00 : f32
    %341 = vector.broadcast %cst_107 : f32 to vector<16x1xf32>
    %342 = arith.subf %341, %340 : vector<16x1xf32>
    %343 = arith.mulf %339, %342 : vector<16x1xf32>
    %344 = vector.broadcast %343 : vector<16x1xf32> to vector<16x32xf32>
    %345 = arith.mulf %336, %344 : vector<16x32xf32>
    %c0_108 = arith.constant 0 : index
    %c0_109 = arith.constant 0 : index
    %346 = vector.load %arg4[%c0_108, %c0_109] : memref<16x32xf32, #tpu.memory_space<vmem>>, vector<16x32xf32>
    tpu.vector_store %arg4[%c0_108, %c0_109], %345 {strides = array<i32>} : memref<16x32xf32, #tpu.memory_space<vmem>>, vector<16x32xf32>,
    return
  }
}

</mosaic_0001>

<llo_original>
// kernel: tpu_custom_call.1
$region0: #{tpu_custom_call.1}
  #allocation0 [shape = 'u32[]', space=smem, size = 0x4, offset = 0x4, fixed_abs, tag = 'smem constant byte address 0x4 - core index']
  #allocation1 [shape = 'u32[144,128]{1,0:T(1,128)}', space=vmem, size = 0x12000, scoped, tag = 'internal scratch']
  #allocation2 [shape = 'f32[16,128]{1,0:T(8,128)}', space=vmem, size = 0x2000, scoped, tag = 'scratch operand']
  #allocation3 [shape = 'f32[16,32]{1,0:T(8,128)}', space=vmem, size = 0x2000, scoped, tag = 'scratch operand']
  %s0 = inlined_call_operand.hbm [shape: f32[16,48], index: 0, kind: input, shape index: {}]
  %s1 = inlined_call_operand.hbm [shape: f32[81,128], index: 1, kind: input, shape index: {}]
  %s2 = inlined_call_operand.vmem [shape: f32[65,128], index: 2, kind: input, shape index: {}]
  %s3 = inlined_call_operand.vmem [shape: f32[33,32], index: 3, kind: input, shape index: {}]
  %s4 = inlined_call_operand.hbm [shape: f32[16,32], index: 4, kind: output, shape index: {}]
  %s5 = sld [smem:[#allocation0]]
  $region34: #{tpu_custom_call.1} parent=0
    _
  %s7 = ssub.s32 1, %s5
  %s8 = scalar_select 0, %s7, %s5
  $region1: #{tpu_custom_call.1} parent=0
    #allocation4 [shape = 'u8[8192]{0}', space=vmem, size = 0x2000, scoped, tag = 'input window, operand 0, single buffered']
    #allocation5 [shape = 's32[1]{0}', space=sflag, size = 0x4, scoped, tag = 'scoped memory for tpu_custom_call.1']
    #allocation6 [shape = 's32[1]{0}', space=sflag, size = 0x4, scoped, tag = 'scoped memory for tpu_custom_call.1']
    #allocation7 [shape = 'u8[45056]{0}', space=vmem, size = 0xb000, scoped, tag = 'input window, operand 1, single buffered']
    #allocation8 [shape = 's32[1]{0}', space=sflag, size = 0x4, scoped, tag = 'scoped memory for tpu_custom_call.1']
    #allocation9 [shape = 'u8[8192]{0}', space=vmem, size = 0x2000, scoped, tag = 'output window, operand 0, single buffered']
    %9 = vsyncpa [#allocation5], 0
    %10 = vsyncpa [#allocation8], 0
    %11 = vsyncpa [#allocation6], 0
    // Predicated region
    $region2: #{tpu_custom_call.1} parent=1 // pred_check
      _
    $region3: #{tpu_custom_call.1} parent=1 // pred_check_branch
      %13 = sbr.rel (0) target = $region5
    $region4: #{tpu_custom_call.1} parent=1 // pred_region
      %s15 = ssub.s32 256, 256
      %16 = vsyncadd [#allocation5], %s15
      %s17 = sshll.u32 [#allocation4], 4
      %s18 = int_to_ptr.vmem [resolvable:$true] %s17
      %23 = dma.hbm_to_vmem [thread:$0]  %s0, 256, %s18, [#allocation5], 128, 128, 8
    $region5: #{tpu_custom_call.1} parent=1 // pred_fallthru
      _
    // Predicated region
    $region6: #{tpu_custom_call.1} parent=1 // pred_check
      _
    $region7: #{tpu_custom_call.1} parent=1 // pred_check_branch
      %25 = sbr.rel (0) target = $region9
    $region8: #{tpu_custom_call.1} parent=1 // pred_region
      %s27 = ssub.s32 1408, 1408
      %28 = vsyncadd [#allocation8], %s27
      %s29 = sshll.u32 [#allocation7], 4
      %s30 = int_to_ptr.vmem [resolvable:$true] %s29
      %35 = dma.hbm_to_vmem [thread:$0]  %s1, 1408, %s30, [#allocation8], 128, 128, 8
    $region9: #{tpu_custom_call.1} parent=1 // pred_fallthru
      _
    // Predicated region
    $region10: #{tpu_custom_call.1} parent=1 // pred_check
      _
    $region11: #{tpu_custom_call.1} parent=1 // pred_check_branch
      %37 = sbr.rel (0) target = $region13
    $region12: #{tpu_custom_call.1} parent=1 // pred_region
      _
    $region13: #{tpu_custom_call.1} parent=1 // pred_fallthru
      _
    // Predicated region
    $region14: #{tpu_custom_call.1} parent=1 // pred_check
      _
    $region15: #{tpu_custom_call.1} parent=1 // pred_check_branch
      %39 = sbr.rel (0) target = $region17
    $region16: #{tpu_custom_call.1} parent=1 // pred_region
      _
    $region17: #{tpu_custom_call.1} parent=1 // pred_fallthru
      _
    // Predicated region
    $region18: #{tpu_custom_call.1} parent=1 // pred_check
      _
    $region19: #{tpu_custom_call.1} parent=1 // pred_check_branch
      %41 = sbr.rel (0) target = $region21
    $region20: #{tpu_custom_call.1} parent=1 // pred_region
      %42 = dma.done [#allocation5], 256
    $region21: #{tpu_custom_call.1} parent=1 // pred_fallthru
      _
    // Predicated region
    $region22: #{tpu_custom_call.1} parent=1 // pred_check
      _
    $region23: #{tpu_custom_call.1} parent=1 // pred_check_branch
      %44 = sbr.rel (0) target = $region25
    $region24: #{tpu_custom_call.1} parent=1 // pred_region
      %45 = dma.done [#allocation8], 1408
    $region25: #{tpu_custom_call.1} parent=1 // pred_fallthru
      _
    %v46 = vld [vmem:[#allocation7] sm:$0xff]
    %v47 = vld [vmem:[#allocation7 + $0x8] sm:$0xff]
    %v48 = vld [vmem:[#allocation7 + $0x10] sm:$0xff]
    %v49 = vld [vmem:[#allocation7 + $0x18] sm:$0xff]
    %v50 = vld [vmem:[#allocation7 + $0x20] sm:$0xff]
    %v51 = vld [vmem:[#allocation7 + $0x28] sm:$0xff]
    %v52 = vld [vmem:[#allocation7 + $0x50] sm:$0x1]
    %v53 = vld [vmem:[#allocation4] sm:$0xff]
    %v54 = vld [vmem:[#allocation4 + $0x8] sm:$0xff]
    %v55 = vlaneseq
    %v56 = vshrl.u32 %v55, 7
    %v57 = vsub.s32 0, %v56
    %v58 = vrot.slane %v52, %v57
    %vm59 = vcmask 392192
    %v61 = vsel %vm59, %v53, 0
    %v64 = vsel %vm59, %v54, 0
    %66 = vmatprep.subr.mxu0 0.0
    %67 = vmatpush1.msra.mxu0 %v46
    %68 = vmatprep.subr.mxu0 0.0
    %69 = vmatpush1.msra.mxu0 %v47
    %70 = vmatprep.subr.mxu0 0.0
    %71 = vmatpush1.msra.mxu0 %v48
    %72 = vmatprep.subr.mxu0 0.0
    %73 = vmatpush1.msra.mxu0 %v49
    %74 = vmatprep.subr.mxu0 0.0
    %75 = vmatpush1.msra.mxu0 %v50
    %76 = vmatprep.subr.mxu0 0.0
    %77 = vmatpush1.msra.mxu0 %v51
    %78 = vmatprep.subr.mxu0 0.0
    %79 = vmatpush1.msra.mxu0 0.0
    %80 = vmatprep.subr.mxu0 0.0
    %81 = vmatpush1.msra.mxu0 0.0
    %82 = vmatprep.subr.mxu0 0.0
    %83 = vmatpush1.msra.mxu0 0.0
    %84 = vmatprep.subr.mxu0 0.0
    %85 = vmatpush1.msra.mxu0 0.0
    %86 = vmatprep.subr.mxu0 0.0
    %87 = vmatpush1.msra.mxu0 0.0
    %88 = vmatprep.subr.mxu0 0.0
    %89 = vmatpush1.msra.mxu0 0.0
    %90 = vmatprep.subr.mxu0 0.0
    %91 = vmatpush1.msra.mxu0 0.0
    %92 = vmatprep.subr.mxu0 0.0
    %93 = vmatpush1.msra.mxu0 0.0
    %94 = vmatprep.subr.mxu0 0.0
    %95 = vmatpush1.msra.mxu0 0.0
    %96 = vmatprep.subr.mxu0 0.0
    %97 = vmatpush1.msra.mxu0 0.0
    %98 = vmatprep.subr.mxu0 0.0
    %99 = vmatpush1.msra.mxu0 0.0
    %100 = vmatprep.subr.mxu0 0.0
    %101 = vmatpush1.msra.mxu0 0.0
    %102 = vmatprep.subr.mxu0 0.0
    %103 = vmatpush1.msra.mxu0 0.0
    %104 = vmatprep.subr.mxu0 0.0
    %105 = vmatpush1.msra.mxu0 0.0
    %106 = vmatprep.subr.mxu0 0.0
    %107 = vmatpush1.msra.mxu0 0.0
    %108 = vmatprep.subr.mxu0 0.0
    %109 = vmatpush1.msra.mxu0 0.0
    %110 = vmatprep.subr.mxu0 0.0
    %111 = vmatpush1.msra.mxu0 0.0
    %112 = vmatprep.subr.mxu0 0.0
    %113 = vmatpush1.msra.mxu0 0.0
    %114 = vmatprep.subr.mxu0 0.0
    %115 = vmatpush1.msra.mxu0 0.0
    %116 = vmatprep.subr.mxu0 0.0
    %117 = vmatpush1.msra.mxu0 0.0
    %118 = vmatprep.subr.mxu0 0.0
    %119 = vmatpush1.msra.mxu0 0.0
    %120 = vmatprep.subr.mxu0 0.0
    %121 = vmatpush1.msra.mxu0 0.0
    %122 = vmatprep.subr.mxu0 0.0
    %123 = vmatpush1.msra.mxu0 0.0
    %124 = vmatprep.subr.mxu0 0.0
    %125 = vmatpush1.msra.mxu0 0.0
    %126 = vmatprep.subr.mxu0 0.0
    %127 = vmatpush1.msra.mxu0 0.0
    %128 = vmatprep.subr.mxu0 0.0
    %129 = vmatpush1.msra.mxu0 0.0
    %130 = vmatprep.mubr.f32.mxu0 0.0
    %131 = vmatmul.mubr.f32.gmra.mrb[0].mxu0 %v61
    %v132 = vpop.f32.mrb[0].mxu0
    %v133 = vadd.f32 %v58, %v132
    %v134 = vpop.f32.mrb[0].mxu0
    %135 = vmatprep.mubr.f32.mxu0 0.0
    %136 = vmatmul.mubr.f32.gmra.mrb[0].mxu0 %v64
    %v137 = vpop.f32.mrb[0].mxu0
    %v138 = vadd.f32 %v58, %v137
    %v139 = vpop.f32.mrb[0].mxu0
    %140 = vdwg.mxu0
    %141 = vst [vmem:[#allocation2] sm:$0xff] %v133
    %142 = vst [vmem:[#allocation2 + $0x8] sm:$0xff] %v138
    %v143 = vld [vmem:[%s2 + $0x40] sm:$0x1]
    %v144 = vlaneseq
    %v145 = vshrl.u32 %v144, 7
    %v146 = vsub.s32 0, %v145
    %v147 = vrot.slane %v143, %v146
    %v148 = vld [vmem:[#allocation7 + $0x30] sm:$0xff]
    %v149 = vld [vmem:[#allocation7 + $0x38] sm:$0xff]
    %v150 = vld [vmem:[#allocation7 + $0x40] sm:$0xff]
    %v151 = vld [vmem:[#allocation7 + $0x48] sm:$0xff]
    %v152 = vld [vmem:[#allocation2] sm:$0x3]
    %vm153 = vcmask 261120
    %v155 = vsel %vm153, 0.0, 0
    %157 = vmatprep.subr.mxu0 0.0
    %158 = vmatpush1.msra.mxu0 %v148
    %159 = vmatprep.subr.mxu0 0.0
    %160 = vmatpush1.msra.mxu0 %v149
    %161 = vmatprep.subr.mxu0 0.0
    %162 = vmatpush1.msra.mxu0 %v150
    %163 = vmatprep.subr.mxu0 0.0
    %164 = vmatpush1.msra.mxu0 %v151
    %165 = vmatprep.subr.mxu0 0.0
    %166 = vmatpush1.msra.mxu0 0.0
    %167 = vmatprep.subr.mxu0 0.0
    %168 = vmatpush1.msra.mxu0 0.0
    %169 = vmatprep.subr.mxu0 0.0
    %170 = vmatpush1.msra.mxu0 0.0
    %171 = vmatprep.subr.mxu0 0.0
    %172 = vmatpush1.msra.mxu0 0.0
    %173 = vmatprep.subr.mxu0 0.0
    %174 = vmatpush1.msra.mxu0 0.0
    %175 = vmatprep.subr.mxu0 0.0
    %176 = vmatpush1.msra.mxu0 0.0
    %177 = vmatprep.subr.mxu0 0.0
    %178 = vmatpush1.msra.mxu0 0.0
    %179 = vmatprep.subr.mxu0 0.0
    %180 = vmatpush1.msra.mxu0 0.0
    %181 = vmatprep.subr.mxu0 0.0
    %182 = vmatpush1.msra.mxu0 0.0
    %183 = vmatprep.subr.mxu0 0.0
    %184 = vmatpush1.msra.mxu0 0.0
    %185 = vmatprep.subr.mxu0 0.0
    %186 = vmatpush1.msra.mxu0 0.0
    %187 = vmatprep.subr.mxu0 0.0
    %188 = vmatpush1.msra.mxu0 0.0
    %189 = vmatprep.subr.mxu0 0.0
    %190 = vmatpush1.msra.mxu0 0.0
    %191 = vmatprep.subr.mxu0 0.0
    %192 = vmatpush1.msra.mxu0 0.0
    %193 = vmatprep.subr.mxu0 0.0
    %194 = vmatpush1.msra.mxu0 0.0
    %195 = vmatprep.subr.mxu0 0.0
    %196 = vmatpush1.msra.mxu0 0.0
    %197 = vmatprep.subr.mxu0 0.0
    %198 = vmatpush1.msra.mxu0 0.0
    %199 = vmatprep.subr.mxu0 0.0
    %200 = vmatpush1.msra.mxu0 0.0
    %201 = vmatprep.subr.mxu0 0.0
    %202 = vmatpush1.msra.mxu0 0.0
    %203 = vmatprep.subr.mxu0 0.0
    %204 = vmatpush1.msra.mxu0 0.0
    %205 = vmatprep.subr.mxu0 0.0
    %206 = vmatpush1.msra.mxu0 0.0
    %207 = vmatprep.subr.mxu0 0.0
    %208 = vmatpush1.msra.mxu0 0.0
    %209 = vmatprep.subr.mxu0 0.0
    %210 = vmatpush1.msra.mxu0 0.0
    %211 = vmatprep.subr.mxu0 0.0
    %212 = vmatpush1.msra.mxu0 0.0
    %213 = vmatprep.subr.mxu0 0.0
    %214 = vmatpush1.msra.mxu0 0.0
    %215 = vmatprep.subr.mxu0 0.0
    %216 = vmatpush1.msra.mxu0 0.0
    %217 = vmatprep.subr.mxu0 0.0
    %218 = vmatpush1.msra.mxu0 0.0
    %219 = vmatprep.subr.mxu0 0.0
    %220 = vmatpush1.msra.mxu0 0.0
    %221 = vmatprep.mubr.f32.mxu0 0.0
    %222 = vmatmul.mubr.f32.gmra.mrb[0].mxu0 %v155
    %v223 = vpop.f32.mrb[0].mxu0
    %v224 = vadd.f32 0.0, %v223
    %v225 = vpop.f32.mrb[0].mxu0
    %226 = vdwg.mxu0
    %v227 = vadd.f32 %v152, %v224
    %v228 = vxor.u32 %v227, 2147483648
    %v229 = vmul.f32 %v228, 1.442695
    %v230 = vpow.pop %v229
    %v231 = vadd.f32 %v230, 1.0
    %v232 = vrcp.pop %v231
    %v233 = vmul.f32 1.0, %v232
    %v234 = vtanh.pop %v227
    %v235 = vmul.f32 %v233, 0.0
    %237 = vrot.lane.b32.xlu0 %v234, 64
    %v238 = vpop.permute.xlu0 %237
    %v240 = vmul.f32 %v233, %v238
    %242 = vrot.lane.b32.xlu0 %v240, 32
    %v243 = vpop.permute.xlu0 %242
    %v245 = vadd.f32 %v235, %v243
    %v246 = vtanh.pop %v245
    %248 = vrot.lane.b32.xlu0 %v246, 64
    %v249 = vpop.permute.xlu0 %248
    %v251 = vmul.f32 %v233, %v249
    %v252 = vld [vmem:[%s2] sm:$0xff]
    %v253 = vld [vmem:[%s2 + $0x8] sm:$0xff]
    %v254 = vld [vmem:[%s2 + $0x10] sm:$0xff]
    %v255 = vld [vmem:[%s2 + $0x18] sm:$0xff]
    %v256 = vld [vmem:[%s2 + $0x20] sm:$0xff]
    %v257 = vld [vmem:[%s2 + $0x28] sm:$0xff]
    %v258 = vld [vmem:[%s2 + $0x30] sm:$0xff]
    %v259 = vld [vmem:[%s2 + $0x38] sm:$0xff]
    %261 = vrot.lane.b32.xlu0 %v251, 32
    %v262 = vpop.permute.xlu0 %261
    %v264 = vsel %vm153, %v262, 0.0
    %vm265 = vcmask 523264
    %v267 = vsel %vm265, %v264, 0
    %269 = vmatprep.subr.mxu0 0.0
    %270 = vmatpush1.msra.mxu0 %v252
    %271 = vmatprep.subr.mxu0 0.0
    %272 = vmatpush1.msra.mxu0 %v253
    %273 = vmatprep.subr.mxu0 0.0
    %274 = vmatpush1.msra.mxu0 %v254
    %275 = vmatprep.subr.mxu0 0.0
    %276 = vmatpush1.msra.mxu0 %v255
    %277 = vmatprep.subr.mxu0 0.0
    %278 = vmatpush1.msra.mxu0 %v256
    %279 = vmatprep.subr.mxu0 0.0
    %280 = vmatpush1.msra.mxu0 %v257
    %281 = vmatprep.subr.mxu0 0.0
    %282 = vmatpush1.msra.mxu0 %v258
    %283 = vmatprep.subr.mxu0 0.0
    %284 = vmatpush1.msra.mxu0 %v259
    %285 = vmatprep.subr.mxu0 0.0
    %286 = vmatpush1.msra.mxu0 0.0
    %287 = vmatprep.subr.mxu0 0.0
    %288 = vmatpush1.msra.mxu0 0.0
    %289 = vmatprep.subr.mxu0 0.0
    %290 = vmatpush1.msra.mxu0 0.0
    %291 = vmatprep.subr.mxu0 0.0
    %292 = vmatpush1.msra.mxu0 0.0
    %293 = vmatprep.subr.mxu0 0.0
    %294 = vmatpush1.msra.mxu0 0.0
    %295 = vmatprep.subr.mxu0 0.0
    %296 = vmatpush1.msra.mxu0 0.0
    %297 = vmatprep.subr.mxu0 0.0
    %298 = vmatpush1.msra.mxu0 0.0
    %299 = vmatprep.subr.mxu0 0.0
    %300 = vmatpush1.msra.mxu0 0.0
    %301 = vmatprep.subr.mxu0 0.0
    %302 = vmatpush1.msra.mxu0 0.0
    %303 = vmatprep.subr.mxu0 0.0
    %304 = vmatpush1.msra.mxu0 0.0
    %305 = vmatprep.subr.mxu0 0.0
    %306 = vmatpush1.msra.mxu0 0.0
    %307 = vmatprep.subr.mxu0 0.0
    %308 = vmatpush1.msra.mxu0 0.0
    %309 = vmatprep.subr.mxu0 0.0
    %310 = vmatpush1.msra.mxu0 0.0
    %311 = vmatprep.subr.mxu0 0.0
    %312 = vmatpush1.msra.mxu0 0.0
    %313 = vmatprep.subr.mxu0 0.0
    %314 = vmatpush1.msra.mxu0 0.0
    %315 = vmatprep.subr.mxu0 0.0
    %316 = vmatpush1.msra.mxu0 0.0
    %317 = vmatprep.subr.mxu0 0.0
    %318 = vmatpush1.msra.mxu0 0.0
    %319 = vmatprep.subr.mxu0 0.0
    %320 = vmatpush1.msra.mxu0 0.0
    %321 = vmatprep.subr.mxu0 0.0
    %322 = vmatpush1.msra.mxu0 0.0
    %323 = vmatprep.subr.mxu0 0.0
    %324 = vmatpush1.msra.mxu0 0.0
    %325 = vmatprep.subr.mxu0 0.0
    %326 = vmatpush1.msra.mxu0 0.0
    %327 = vmatprep.subr.mxu0 0.0
    %328 = vmatpush1.msra.mxu0 0.0
    %329 = vmatprep.subr.mxu0 0.0
    %330 = vmatpush1.msra.mxu0 0.0
    %331 = vmatprep.subr.mxu0 0.0
    %332 = vmatpush1.msra.mxu0 0.0
    %333 = vmatprep.mubr.f32.mxu0 0.0
    %334 = vmatmul.mubr.f32.gmra.mrb[0].mxu0 %v267
    %v335 = vpop.f32.mrb[0].mxu0
    %v336 = vadd.f32 %v147, %v335
    %v337 = vpop.f32.mrb[0].mxu0
    %338 = vdwg.mxu0
    %v339 = vxor.u32 %v336, 2147483648
    %v340 = vmul.f32 %v339, 1.442695
    %v341 = vpow.pop %v340
    %v342 = vadd.f32 %v341, 1.0
    %v343 = vrcp.pop %v342
    %v344 = vmul.f32 1.0, %v343
    %v345 = vtanh.pop %v336
    %v346 = vmul.f32 %v344, 0.0
    %348 = vrot.lane.b32.xlu0 %v345, 64
    %v349 = vpop.permute.xlu0 %348
    %v351 = vmul.f32 %v344, %v349
    %353 = vrot.lane.b32.xlu0 %v351, 32
    %v354 = vpop.permute.xlu0 %353
    %v356 = vadd.f32 %v346, %v354
    %v357 = vtanh.pop %v356
    %359 = vrot.lane.b32.xlu0 %v357, 64
    %v360 = vpop.permute.xlu0 %359
    %v362 = vmul.f32 %v344, %v360
    %364 = vrot.lane.b32.xlu0 %v362, 32
    %v365 = vpop.permute.xlu0 %364
    %vm367 = vcmask 254976
    %368 = vst.msk [vmem:[#allocation3] sm:$0x3] %vm367, %v365
    %v369 = vld [vmem:[#allocation7 + $0x30] sm:$0xff]
    %v370 = vld [vmem:[#allocation7 + $0x38] sm:$0xff]
    %v371 = vld [vmem:[#allocation7 + $0x40] sm:$0xff]
    %v372 = vld [vmem:[#allocation7 + $0x48] sm:$0xff]
    %v373 = vld [vmem:[#allocation2 + $0x2] sm:$0x3]
    %v374 = vsel %vm153, %v262, 0
    %376 = vmatprep.subr.mxu0 0.0
    %377 = vmatpush1.msra.mxu0 %v369
    %378 = vmatprep.subr.mxu0 0.0
    %379 = vmatpush1.msra.mxu0 %v370
    %380 = vmatprep.subr.mxu0 0.0
    %381 = vmatpush1.msra.mxu0 %v371
    %382 = vmatprep.subr.mxu0 0.0
    %383 = vmatpush1.msra.mxu0 %v372
    %384 = vmatprep.subr.mxu0 0.0
    %385 = vmatpush1.msra.mxu0 0.0
    %386 = vmatprep.subr.mxu0 0.0
    %387 = vmatpush1.msra.mxu0 0.0
    %388 = vmatprep.subr.mxu0 0.0
    %389 = vmatpush1.msra.mxu0 0.0
    %390 = vmatprep.subr.mxu0 0.0
    %391 = vmatpush1.msra.mxu0 0.0
    %392 = vmatprep.subr.mxu0 0.0
    %393 = vmatpush1.msra.mxu0 0.0
    %394 = vmatprep.subr.mxu0 0.0
    %395 = vmatpush1.msra.mxu0 0.0
    %396 = vmatprep.subr.mxu0 0.0
    %397 = vmatpush1.msra.mxu0 0.0
    %398 = vmatprep.subr.mxu0 0.0
    %399 = vmatpush1.msra.mxu0 0.0
    %400 = vmatprep.subr.mxu0 0.0
    %401 = vmatpush1.msra.mxu0 0.0
    %402 = vmatprep.subr.mxu0 0.0
    %403 = vmatpush1.msra.mxu0 0.0
    %404 = vmatprep.subr.mxu0 0.0
    %405 = vmatpush1.msra.mxu0 0.0
    %406 = vmatprep.subr.mxu0 0.0
    %407 = vmatpush1.msra.mxu0 0.0
    %408 = vmatprep.subr.mxu0 0.0
    %409 = vmatpush1.msra.mxu0 0.0
    %410 = vmatprep.subr.mxu0 0.0
    %411 = vmatpush1.msra.mxu0 0.0
    %412 = vmatprep.subr.mxu0 0.0
    %413 = vmatpush1.msra.mxu0 0.0
    %414 = vmatprep.subr.mxu0 0.0
    %415 = vmatpush1.msra.mxu0 0.0
    %416 = vmatprep.subr.mxu0 0.0
    %417 = vmatpush1.msra.mxu0 0.0
    %418 = vmatprep.subr.mxu0 0.0
    %419 = vmatpush1.msra.mxu0 0.0
    %420 = vmatprep.subr.mxu0 0.0
    %421 = vmatpush1.msra.mxu0 0.0
    %422 = vmatprep.subr.mxu0 0.0
    %423 = vmatpush1.msra.mxu0 0.0
    %424 = vmatprep.subr.mxu0 0.0
    %425 = vmatpush1.msra.mxu0 0.0
    %426 = vmatprep.subr.mxu0 0.0
    %427 = vmatpush1.msra.mxu0 0.0
    %428 = vmatprep.subr.mxu0 0.0
    %429 = vmatpush1.msra.mxu0 0.0
    %430 = vmatprep.subr.mxu0 0.0
    %431 = vmatpush1.msra.mxu0 0.0
    %432 = vmatprep.subr.mxu0 0.0
    %433 = vmatpush1.msra.mxu0 0.0
    %434 = vmatprep.subr.mxu0 0.0
    %435 = vmatpush1.msra.mxu0 0.0
    %436 = vmatprep.subr.mxu0 0.0
    %437 = vmatpush1.msra.mxu0 0.0
    %438 = vmatprep.subr.mxu0 0.0
    %439 = vmatpush1.msra.mxu0 0.0
    %440 = vmatprep.mubr.f32.mxu0 0.0
    %441 = vmatmul.mubr.f32.gmra.mrb[0].mxu0 %v374
    %v442 = vpop.f32.mrb[0].mxu0
    %v443 = vadd.f32 0.0, %v442
    %v444 = vpop.f32.mrb[0].mxu0
    %445 = vdwg.mxu0
    %v446 = vadd.f32 %v373, %v443
    %v447 = vxor.u32 %v446, 2147483648
    %v448 = vmul.f32 %v447, 1.442695
    %v449 = vpow.pop %v448
    %v450 = vadd.f32 %v449, 1.0
    %v451 = vrcp.pop %v450
    %v452 = vmul.f32 1.0, %v451
    %v453 = vtanh.pop %v446
    %v454 = vmul.f32 %v452, %v245
    %456 = vrot.lane.b32.xlu0 %v453, 64
    %v457 = vpop.permute.xlu0 %456
    %v459 = vmul.f32 %v452, %v457
    %461 = vrot.lane.b32.xlu0 %v459, 32
    %v462 = vpop.permute.xlu0 %461
    %v464 = vadd.f32 %v454, %v462
    %v465 = vtanh.pop %v464
    %467 = vrot.lane.b32.xlu0 %v465, 64
    %v468 = vpop.permute.xlu0 %467
    %v470 = vmul.f32 %v452, %v468
    %v471 = vld [vmem:[%s2] sm:$0xff]
    %v472 = vld [vmem:[%s2 + $0x8] sm:$0xff]
    %v473 = vld [vmem:[%s2 + $0x10] sm:$0xff]
    %v474 = vld [vmem:[%s2 + $0x18] sm:$0xff]
    %v475 = vld [vmem:[%s2 + $0x20] sm:$0xff]
    %v476 = vld [vmem:[%s2 + $0x28] sm:$0xff]
    %v477 = vld [vmem:[%s2 + $0x30] sm:$0xff]
    %v478 = vld [vmem:[%s2 + $0x38] sm:$0xff]
    %480 = vrot.lane.b32.xlu0 %v470, 32
    %v481 = vpop.permute.xlu0 %480
    %483 = vrot.lane.b32.xlu0 %v362, 64
    %v484 = vpop.permute.xlu0 %483
    %v486 = vsel %vm153, %v481, %v484
    %v488 = vsel %vm265, %v486, 0
    %490 = vmatprep.subr.mxu0 0.0
    %491 = vmatpush1.msra.mxu0 %v471
    %492 = vmatprep.subr.mxu0 0.0
    %493 = vmatpush1.msra.mxu0 %v472
    %494 = vmatprep.subr.mxu0 0.0
    %495 = vmatpush1.msra.mxu0 %v473
    %496 = vmatprep.subr.mxu0 0.0
    %497 = vmatpush1.msra.mxu0 %v474
    %498 = vmatprep.subr.mxu0 0.0
    %499 = vmatpush1.msra.mxu0 %v475
    %500 = vmatprep.subr.mxu0 0.0
    %501 = vmatpush1.msra.mxu0 %v476
    %502 = vmatprep.subr.mxu0 0.0
    %503 = vmatpush1.msra.mxu0 %v477
    %504 = vmatprep.subr.mxu0 0.0
    %505 = vmatpush1.msra.mxu0 %v478
    %506 = vmatprep.subr.mxu0 0.0
    %507 = vmatpush1.msra.mxu0 0.0
    %508 = vmatprep.subr.mxu0 0.0
    %509 = vmatpush1.msra.mxu0 0.0
    %510 = vmatprep.subr.mxu0 0.0
    %511 = vmatpush1.msra.mxu0 0.0
    %512 = vmatprep.subr.mxu0 0.0
    %513 = vmatpush1.msra.mxu0 0.0
    %514 = vmatprep.subr.mxu0 0.0
    %515 = vmatpush1.msra.mxu0 0.0
    %516 = vmatprep.subr.mxu0 0.0
    %517 = vmatpush1.msra.mxu0 0.0
    %518 = vmatprep.subr.mxu0 0.0
    %519 = vmatpush1.msra.mxu0 0.0
    %520 = vmatprep.subr.mxu0 0.0
    %521 = vmatpush1.msra.mxu0 0.0
    %522 = vmatprep.subr.mxu0 0.0
    %523 = vmatpush1.msra.mxu0 0.0
    %524 = vmatprep.subr.mxu0 0.0
    %525 = vmatpush1.msra.mxu0 0.0
    %526 = vmatprep.subr.mxu0 0.0
    %527 = vmatpush1.msra.mxu0 0.0
    %528 = vmatprep.subr.mxu0 0.0
    %529 = vmatpush1.msra.mxu0 0.0
    %530 = vmatprep.subr.mxu0 0.0
    %531 = vmatpush1.msra.mxu0 0.0
    %532 = vmatprep.subr.mxu0 0.0
    %533 = vmatpush1.msra.mxu0 0.0
    %534 = vmatprep.subr.mxu0 0.0
    %535 = vmatpush1.msra.mxu0 0.0
    %536 = vmatprep.subr.mxu0 0.0
    %537 = vmatpush1.msra.mxu0 0.0
    %538 = vmatprep.subr.mxu0 0.0
    %539 = vmatpush1.msra.mxu0 0.0
    %540 = vmatprep.subr.mxu0 0.0
    %541 = vmatpush1.msra.mxu0 0.0
    %542 = vmatprep.subr.mxu0 0.0
    %543 = vmatpush1.msra.mxu0 0.0
    %544 = vmatprep.subr.mxu0 0.0
    %545 = vmatpush1.msra.mxu0 0.0
    %546 = vmatprep.subr.mxu0 0.0
    %547 = vmatpush1.msra.mxu0 0.0
    %548 = vmatprep.subr.mxu0 0.0
    %549 = vmatpush1.msra.mxu0 0.0
    %550 = vmatprep.subr.mxu0 0.0
    %551 = vmatpush1.msra.mxu0 0.0
    %552 = vmatprep.subr.mxu0 0.0
    %553 = vmatpush1.msra.mxu0 0.0
    %554 = vmatprep.mubr.f32.mxu0 0.0
    %555 = vmatmul.mubr.f32.gmra.mrb[0].mxu0 %v488
    %v556 = vpop.f32.mrb[0].mxu0
    %v557 = vadd.f32 %v147, %v556
    %v558 = vpop.f32.mrb[0].mxu0
    %559 = vdwg.mxu0
    %v560 = vxor.u32 %v557, 2147483648
    %v561 = vmul.f32 %v560, 1.442695
    %v562 = vpow.pop %v561
    %v563 = vadd.f32 %v562, 1.0
    %v564 = vrcp.pop %v563
    %v565 = vmul.f32 1.0, %v564
    %v566 = vtanh.pop %v557
    %v567 = vmul.f32 %v565, %v356
    %569 = vrot.lane.b32.xlu0 %v566, 64
    %v570 = vpop.permute.xlu0 %569
    %v572 = vmul.f32 %v565, %v570
    %574 = vrot.lane.b32.xlu0 %v572, 32
    %v575 = vpop.permute.xlu0 %574
    %v577 = vadd.f32 %v567, %v575
    %v578 = vtanh.pop %v577
    %580 = vrot.lane.b32.xlu0 %v578, 64
    %v581 = vpop.permute.xlu0 %580
    %v583 = vmul.f32 %v565, %v581
    %585 = vrot.lane.b32.xlu0 %v583, 32
    %v586 = vpop.permute.xlu0 %585
    %588 = vst.msk [vmem:[#allocation3 + $0x2] sm:$0x3] %vm367, %v586
    %v589 = vld [vmem:[#allocation7 + $0x30] sm:$0xff]
    %v590 = vld [vmem:[#allocation7 + $0x38] sm:$0xff]
    %v591 = vld [vmem:[#allocation7 + $0x40] sm:$0xff]
    %v592 = vld [vmem:[#allocation7 + $0x48] sm:$0xff]
    %v593 = vld [vmem:[#allocation2 + $0x4] sm:$0x3]
    %v594 = vsel %vm153, %v481, 0
    %596 = vmatprep.subr.mxu0 0.0
    %597 = vmatpush1.msra.mxu0 %v589
    %598 = vmatprep.subr.mxu0 0.0
    %599 = vmatpush1.msra.mxu0 %v590
    %600 = vmatprep.subr.mxu0 0.0
    %601 = vmatpush1.msra.mxu0 %v591
    %602 = vmatprep.subr.mxu0 0.0
    %603 = vmatpush1.msra.mxu0 %v592
    %604 = vmatprep.subr.mxu0 0.0
    %605 = vmatpush1.msra.mxu0 0.0
    %606 = vmatprep.subr.mxu0 0.0
    %607 = vmatpush1.msra.mxu0 0.0
    %608 = vmatprep.subr.mxu0 0.0
    %609 = vmatpush1.msra.mxu0 0.0
    %610 = vmatprep.subr.mxu0 0.0
    %611 = vmatpush1.msra.mxu0 0.0
    %612 = vmatprep.subr.mxu0 0.0
    %613 = vmatpush1.msra.mxu0 0.0
    %614 = vmatprep.subr.mxu0 0.0
    %615 = vmatpush1.msra.mxu0 0.0
    %616 = vmatprep.subr.mxu0 0.0
    %617 = vmatpush1.msra.mxu0 0.0
    %618 = vmatprep.subr.mxu0 0.0
    %619 = vmatpush1.msra.mxu0 0.0
    %620 = vmatprep.subr.mxu0 0.0
    %621 = vmatpush1.msra.mxu0 0.0
    %622 = vmatprep.subr.mxu0 0.0
    %623 = vmatpush1.msra.mxu0 0.0
    %624 = vmatprep.subr.mxu0 0.0
    %625 = vmatpush1.msra.mxu0 0.0
    %626 = vmatprep.subr.mxu0 0.0
    %627 = vmatpush1.msra.mxu0 0.0
    %628 = vmatprep.subr.mxu0 0.0
    %629 = vmatpush1.msra.mxu0 0.0
    %630 = vmatprep.subr.mxu0 0.0
    %631 = vmatpush1.msra.mxu0 0.0
    %632 = vmatprep.subr.mxu0 0.0
    %633 = vmatpush1.msra.mxu0 0.0
    %634 = vmatprep.subr.mxu0 0.0
    %635 = vmatpush1.msra.mxu0 0.0
    %636 = vmatprep.subr.mxu0 0.0
    %637 = vmatpush1.msra.mxu0 0.0
    %638 = vmatprep.subr.mxu0 0.0
    %639 = vmatpush1.msra.mxu0 0.0
    %640 = vmatprep.subr.mxu0 0.0
    %641 = vmatpush1.msra.mxu0 0.0
    %642 = vmatprep.subr.mxu0 0.0
    %643 = vmatpush1.msra.mxu0 0.0
    %644 = vmatprep.subr.mxu0 0.0
    %645 = vmatpush1.msra.mxu0 0.0
    %646 = vmatprep.subr.mxu0 0.0
    %647 = vmatpush1.msra.mxu0 0.0
    %648 = vmatprep.subr.mxu0 0.0
    %649 = vmatpush1.msra.mxu0 0.0
    %650 = vmatprep.subr.mxu0 0.0
    %651 = vmatpush1.msra.mxu0 0.0
    %652 = vmatprep.subr.mxu0 0.0
    %653 = vmatpush1.msra.mxu0 0.0
    %654 = vmatprep.subr.mxu0 0.0
    %655 = vmatpush1.msra.mxu0 0.0
    %656 = vmatprep.subr.mxu0 0.0
    %657 = vmatpush1.msra.mxu0 0.0
    %658 = vmatprep.subr.mxu0 0.0
    %659 = vmatpush1.msra.mxu0 0.0
    %660 = vmatprep.mubr.f32.mxu0 0.0
    %661 = vmatmul.mubr.f32.gmra.mrb[0].mxu0 %v594
    %v662 = vpop.f32.mrb[0].mxu0
    %v663 = vadd.f32 0.0, %v662
    %v664 = vpop.f32.mrb[0].mxu0
    %665 = vdwg.mxu0
    %v666 = vadd.f32 %v593, %v663
    %v667 = vxor.u32 %v666, 2147483648
    %v668 = vmul.f32 %v667, 1.442695
    %v669 = vpow.pop %v668
    %v670 = vadd.f32 %v669, 1.0
    %v671 = vrcp.pop %v670
    %v672 = vmul.f32 1.0, %v671
    %v673 = vtanh.pop %v666
    %v674 = vmul.f32 %v672, %v464
    %676 = vrot.lane.b32.xlu0 %v673, 64
    %v677 = vpop.permute.xlu0 %676
    %v679 = vmul.f32 %v672, %v677
    %681 = vrot.lane.b32.xlu0 %v679, 32
    %v682 = vpop.permute.xlu0 %681
    %v684 = vadd.f32 %v674, %v682
    %v685 = vtanh.pop %v684
    %687 = vrot.lane.b32.xlu0 %v685, 64
    %v688 = vpop.permute.xlu0 %687
    %v690 = vmul.f32 %v672, %v688
    %v691 = vld [vmem:[%s2] sm:$0xff]
    %v692 = vld [vmem:[%s2 + $0x8] sm:$0xff]
    %v693 = vld [vmem:[%s2 + $0x10] sm:$0xff]
    %v694 = vld [vmem:[%s2 + $0x18] sm:$0xff]
    %v695 = vld [vmem:[%s2 + $0x20] sm:$0xff]
    %v696 = vld [vmem:[%s2 + $0x28] sm:$0xff]
    %v697 = vld [vmem:[%s2 + $0x30] sm:$0xff]
    %v698 = vld [vmem:[%s2 + $0x38] sm:$0xff]
    %700 = vrot.lane.b32.xlu0 %v690, 32
    %v701 = vpop.permute.xlu0 %700
    %703 = vrot.lane.b32.xlu0 %v583, 64
    %v704 = vpop.permute.xlu0 %703
    %v706 = vsel %vm153, %v701, %v704
    %v708 = vsel %vm265, %v706, 0
    %710 = vmatprep.subr.mxu0 0.0
    %711 = vmatpush1.msra.mxu0 %v691
    %712 = vmatprep.subr.mxu0 0.0
    %713 = vmatpush1.msra.mxu0 %v692
    %714 = vmatprep.subr.mxu0 0.0
    %715 = vmatpush1.msra.mxu0 %v693
    %716 = vmatprep.subr.mxu0 0.0
    %717 = vmatpush1.msra.mxu0 %v694
    %718 = vmatprep.subr.mxu0 0.0
    %719 = vmatpush1.msra.mxu0 %v695
    %720 = vmatprep.subr.mxu0 0.0
    %721 = vmatpush1.msra.mxu0 %v696
    %722 = vmatprep.subr.mxu0 0.0
    %723 = vmatpush1.msra.mxu0 %v697
    %724 = vmatprep.subr.mxu0 0.0
    %725 = vmatpush1.msra.mxu0 %v698
    %726 = vmatprep.subr.mxu0 0.0
    %727 = vmatpush1.msra.mxu0 0.0
    %728 = vmatprep.subr.mxu0 0.0
    %729 = vmatpush1.msra.mxu0 0.0
    %730 = vmatprep.subr.mxu0 0.0
    %731 = vmatpush1.msra.mxu0 0.0
    %732 = vmatprep.subr.mxu0 0.0
    %733 = vmatpush1.msra.mxu0 0.0
    %734 = vmatprep.subr.mxu0 0.0
    %735 = vmatpush1.msra.mxu0 0.0
    %736 = vmatprep.subr.mxu0 0.0
    %737 = vmatpush1.msra.mxu0 0.0
    %738 = vmatprep.subr.mxu0 0.0
    %739 = vmatpush1.msra.mxu0 0.0
    %740 = vmatprep.subr.mxu0 0.0
    %741 = vmatpush1.msra.mxu0 0.0
    %742 = vmatprep.subr.mxu0 0.0
    %743 = vmatpush1.msra.mxu0 0.0
    %744 = vmatprep.subr.mxu0 0.0
    %745 = vmatpush1.msra.mxu0 0.0
    %746 = vmatprep.subr.mxu0 0.0
    %747 = vmatpush1.msra.mxu0 0.0
    %748 = vmatprep.subr.mxu0 0.0
    %749 = vmatpush1.msra.mxu0 0.0
    %750 = vmatprep.subr.mxu0 0.0
    %751 = vmatpush1.msra.mxu0 0.0
    %752 = vmatprep.subr.mxu0 0.0
    %753 = vmatpush1.msra.mxu0 0.0
    %754 = vmatprep.subr.mxu0 0.0
    %755 = vmatpush1.msra.mxu0 0.0
    %756 = vmatprep.subr.mxu0 0.0
    %757 = vmatpush1.msra.mxu0 0.0
    %758 = vmatprep.subr.mxu0 0.0
    %759 = vmatpush1.msra.mxu0 0.0
    %760 = vmatprep.subr.mxu0 0.0
    %761 = vmatpush1.msra.mxu0 0.0
    %762 = vmatprep.subr.mxu0 0.0
    %763 = vmatpush1.msra.mxu0 0.0
    %764 = vmatprep.subr.mxu0 0.0
    %765 = vmatpush1.msra.mxu0 0.0
    %766 = vmatprep.subr.mxu0 0.0
    %767 = vmatpush1.msra.mxu0 0.0
    %768 = vmatprep.subr.mxu0 0.0
    %769 = vmatpush1.msra.mxu0 0.0
    %770 = vmatprep.subr.mxu0 0.0
    %771 = vmatpush1.msra.mxu0 0.0
    %772 = vmatprep.subr.mxu0 0.0
    %773 = vmatpush1.msra.mxu0 0.0
    %774 = vmatprep.mubr.f32.mxu0 0.0
    %775 = vmatmul.mubr.f32.gmra.mrb[0].mxu0 %v708
    %v776 = vpop.f32.mrb[0].mxu0
    %v777 = vadd.f32 %v147, %v776
    %v778 = vpop.f32.mrb[0].mxu0
    %779 = vdwg.mxu0
    %v780 = vxor.u32 %v777, 2147483648
    %v781 = vmul.f32 %v780, 1.442695
    %v782 = vpow.pop %v781
    %v783 = vadd.f32 %v782, 1.0
    %v784 = vrcp.pop %v783
    %v785 = vmul.f32 1.0, %v784
    %v786 = vtanh.pop %v777
    %v787 = vmul.f32 %v785, %v577
    %789 = vrot.lane.b32.xlu0 %v786, 64
    %v790 = vpop.permute.xlu0 %789
    %v792 = vmul.f32 %v785, %v790
    %794 = vrot.lane.b32.xlu0 %v792, 32
    %v795 = vpop.permute.xlu0 %794
    %v797 = vadd.f32 %v787, %v795
    %v798 = vtanh.pop %v797
    %800 = vrot.lane.b32.xlu0 %v798, 64
    %v801 = vpop.permute.xlu0 %800
    %v803 = vmul.f32 %v785, %v801
    %805 = vrot.lane.b32.xlu0 %v803, 32
    %v806 = vpop.permute.xlu0 %805
    %808 = vst.msk [vmem:[#allocation3 + $0x4] sm:$0x3] %vm367, %v806
    %v809 = vld [vmem:[#allocation7 + $0x30] sm:$0xff]
    %v810 = vld [vmem:[#allocation7 + $0x38] sm:$0xff]
    %v811 = vld [vmem:[#allocation7 + $0x40] sm:$0xff]
    %v812 = vld [vmem:[#allocation7 + $0x48] sm:$0xff]
    %v813 = vld [vmem:[#allocation2 + $0x6] sm:$0x3]
    %v814 = vsel %vm153, %v701, 0
    %816 = vmatprep.subr.mxu0 0.0
    %817 = vmatpush1.msra.mxu0 %v809
    %818 = vmatprep.subr.mxu0 0.0
    %819 = vmatpush1.msra.mxu0 %v810
    %820 = vmatprep.subr.mxu0 0.0
    %821 = vmatpush1.msra.mxu0 %v811
    %822 = vmatprep.subr.mxu0 0.0
    %823 = vmatpush1.msra.mxu0 %v812
    %824 = vmatprep.subr.mxu0 0.0
    %825 = vmatpush1.msra.mxu0 0.0
    %826 = vmatprep.subr.mxu0 0.0
    %827 = vmatpush1.msra.mxu0 0.0
    %828 = vmatprep.subr.mxu0 0.0
    %829 = vmatpush1.msra.mxu0 0.0
    %830 = vmatprep.subr.mxu0 0.0
    %831 = vmatpush1.msra.mxu0 0.0
    %832 = vmatprep.subr.mxu0 0.0
    %833 = vmatpush1.msra.mxu0 0.0
    %834 = vmatprep.subr.mxu0 0.0
    %835 = vmatpush1.msra.mxu0 0.0
    %836 = vmatprep.subr.mxu0 0.0
    %837 = vmatpush1.msra.mxu0 0.0
    %838 = vmatprep.subr.mxu0 0.0
    %839 = vmatpush1.msra.mxu0 0.0
    %840 = vmatprep.subr.mxu0 0.0
    %841 = vmatpush1.msra.mxu0 0.0
    %842 = vmatprep.subr.mxu0 0.0
    %843 = vmatpush1.msra.mxu0 0.0
    %844 = vmatprep.subr.mxu0 0.0
    %845 = vmatpush1.msra.mxu0 0.0
    %846 = vmatprep.subr.mxu0 0.0
    %847 = vmatpush1.msra.mxu0 0.0
    %848 = vmatprep.subr.mxu0 0.0
    %849 = vmatpush1.msra.mxu0 0.0
    %850 = vmatprep.subr.mxu0 0.0
    %851 = vmatpush1.msra.mxu0 0.0
    %852 = vmatprep.subr.mxu0 0.0
    %853 = vmatpush1.msra.mxu0 0.0
    %854 = vmatprep.subr.mxu0 0.0
    %855 = vmatpush1.msra.mxu0 0.0
    %856 = vmatprep.subr.mxu0 0.0
    %857 = vmatpush1.msra.mxu0 0.0
    %858 = vmatprep.subr.mxu0 0.0
    %859 = vmatpush1.msra.mxu0 0.0
    %860 = vmatprep.subr.mxu0 0.0
    %861 = vmatpush1.msra.mxu0 0.0
    %862 = vmatprep.subr.mxu0 0.0
    %863 = vmatpush1.msra.mxu0 0.0
    %864 = vmatprep.subr.mxu0 0.0
    %865 = vmatpush1.msra.mxu0 0.0
    %866 = vmatprep.subr.mxu0 0.0
    %867 = vmatpush1.msra.mxu0 0.0
    %868 = vmatprep.subr.mxu0 0.0
    %869 = vmatpush1.msra.mxu0 0.0
    %870 = vmatprep.subr.mxu0 0.0
    %871 = vmatpush1.msra.mxu0 0.0
    %872 = vmatprep.subr.mxu0 0.0
    %873 = vmatpush1.msra.mxu0 0.0
    %874 = vmatprep.subr.mxu0 0.0
    %875 = vmatpush1.msra.mxu0 0.0
    %876 = vmatprep.subr.mxu0 0.0
    %877 = vmatpush1.msra.mxu0 0.0
    %878 = vmatprep.subr.mxu0 0.0
    %879 = vmatpush1.msra.mxu0 0.0
    %880 = vmatprep.mubr.f32.mxu0 0.0
    %881 = vmatmul.mubr.f32.gmra.mrb[0].mxu0 %v814
    %v882 = vpop.f32.mrb[0].mxu0
    %v883 = vadd.f32 0.0, %v882
    %v884 = vpop.f32.mrb[0].mxu0
    %885 = vdwg.mxu0
    %v886 = vadd.f32 %v813, %v883
    %v887 = vxor.u32 %v886, 2147483648
    %v888 = vmul.f32 %v887, 1.442695
    %v889 = vpow.pop %v888
    %v890 = vadd.f32 %v889, 1.0
    %v891 = vrcp.pop %v890
    %v892 = vmul.f32 1.0, %v891
    %v893 = vtanh.pop %v886
    %v894 = vmul.f32 %v892, %v684
    %896 = vrot.lane.b32.xlu0 %v893, 64
    %v897 = vpop.permute.xlu0 %896
    %v899 = vmul.f32 %v892, %v897
    %901 = vrot.lane.b32.xlu0 %v899, 32
    %v902 = vpop.permute.xlu0 %901
    %v904 = vadd.f32 %v894, %v902
    %v905 = vtanh.pop %v904
    %907 = vrot.lane.b32.xlu0 %v905, 64
    %v908 = vpop.permute.xlu0 %907
    %v910 = vmul.f32 %v892, %v908
    %v911 = vld [vmem:[%s2] sm:$0xff]
    %v912 = vld [vmem:[%s2 + $0x8] sm:$0xff]
    %v913 = vld [vmem:[%s2 + $0x10] sm:$0xff]
    %v914 = vld [vmem:[%s2 + $0x18] sm:$0xff]
    %v915 = vld [vmem:[%s2 + $0x20] sm:$0xff]
    %v916 = vld [vmem:[%s2 + $0x28] sm:$0xff]
    %v917 = vld [vmem:[%s2 + $0x30] sm:$0xff]
    %v918 = vld [vmem:[%s2 + $0x38] sm:$0xff]
    %920 = vrot.lane.b32.xlu0 %v910, 32
    %v921 = vpop.permute.xlu0 %920
    %923 = vrot.lane.b32.xlu0 %v803, 64
    %v924 = vpop.permute.xlu0 %923
    %v926 = vsel %vm153, %v921, %v924
    %v928 = vsel %vm265, %v926, 0
    %930 = vmatprep.subr.mxu0 0.0
    %931 = vmatpush1.msra.mxu0 %v911
    %932 = vmatprep.subr.mxu0 0.0
    %933 = vmatpush1.msra.mxu0 %v912
    %934 = vmatprep.subr.mxu0 0.0
    %935 = vmatpush1.msra.mxu0 %v913
    %936 = vmatprep.subr.mxu0 0.0
    %937 = vmatpush1.msra.mxu0 %v914
    %938 = vmatprep.subr.mxu0 0.0
    %939 = vmatpush1.msra.mxu0 %v915
    %940 = vmatprep.subr.mxu0 0.0
    %941 = vmatpush1.msra.mxu0 %v916
    %942 = vmatprep.subr.mxu0 0.0
    %943 = vmatpush1.msra.mxu0 %v917
    %944 = vmatprep.subr.mxu0 0.0
    %945 = vmatpush1.msra.mxu0 %v918
    %946 = vmatprep.subr.mxu0 0.0
    %947 = vmatpush1.msra.mxu0 0.0
    %948 = vmatprep.subr.mxu0 0.0
    %949 = vmatpush1.msra.mxu0 0.0
    %950 = vmatprep.subr.mxu0 0.0
    %951 = vmatpush1.msra.mxu0 0.0
    %952 = vmatprep.subr.mxu0 0.0
    %953 = vmatpush1.msra.mxu0 0.0
    %954 = vmatprep.subr.mxu0 0.0
    %955 = vmatpush1.msra.mxu0 0.0
    %956 = vmatprep.subr.mxu0 0.0
    %957 = vmatpush1.msra.mxu0 0.0
    %958 = vmatprep.subr.mxu0 0.0
    %959 = vmatpush1.msra.mxu0 0.0
    %960 = vmatprep.subr.mxu0 0.0
    %961 = vmatpush1.msra.mxu0 0.0
    %962 = vmatprep.subr.mxu0 0.0
    %963 = vmatpush1.msra.mxu0 0.0
    %964 = vmatprep.subr.mxu0 0.0
    %965 = vmatpush1.msra.mxu0 0.0
    %966 = vmatprep.subr.mxu0 0.0
    %967 = vmatpush1.msra.mxu0 0.0
    %968 = vmatprep.subr.mxu0 0.0
    %969 = vmatpush1.msra.mxu0 0.0
    %970 = vmatprep.subr.mxu0 0.0
    %971 = vmatpush1.msra.mxu0 0.0
    %972 = vmatprep.subr.mxu0 0.0
    %973 = vmatpush1.msra.mxu0 0.0
    %974 = vmatprep.subr.mxu0 0.0
    %975 = vmatpush1.msra.mxu0 0.0
    %976 = vmatprep.subr.mxu0 0.0
    %977 = vmatpush1.msra.mxu0 0.0
    %978 = vmatprep.subr.mxu0 0.0
    %979 = vmatpush1.msra.mxu0 0.0
    %980 = vmatprep.subr.mxu0 0.0
    %981 = vmatpush1.msra.mxu0 0.0
    %982 = vmatprep.subr.mxu0 0.0
    %983 = vmatpush1.msra.mxu0 0.0
    %984 = vmatprep.subr.mxu0 0.0
    %985 = vmatpush1.msra.mxu0 0.0
    %986 = vmatprep.subr.mxu0 0.0
    %987 = vmatpush1.msra.mxu0 0.0
    %988 = vmatprep.subr.mxu0 0.0
    %989 = vmatpush1.msra.mxu0 0.0
    %990 = vmatprep.subr.mxu0 0.0
    %991 = vmatpush1.msra.mxu0 0.0
    %992 = vmatprep.subr.mxu0 0.0
    %993 = vmatpush1.msra.mxu0 0.0
    %994 = vmatprep.mubr.f32.mxu0 0.0
    %995 = vmatmul.mubr.f32.gmra.mrb[0].mxu0 %v928
    %v996 = vpop.f32.mrb[0].mxu0
    %v997 = vadd.f32 %v147, %v996
    %v998 = vpop.f32.mrb[0].mxu0
    %999 = vdwg.mxu0
    %v1000 = vxor.u32 %v997, 2147483648
    %v1001 = vmul.f32 %v1000, 1.442695
    %v1002 = vpow.pop %v1001
    %v1003 = vadd.f32 %v1002, 1.0
    %v1004 = vrcp.pop %v1003
    %v1005 = vmul.f32 1.0, %v1004
    %v1006 = vtanh.pop %v997
    %v1007 = vmul.f32 %v1005, %v797
    %1009 = vrot.lane.b32.xlu0 %v1006, 64
    %v1010 = vpop.permute.xlu0 %1009
    %v1012 = vmul.f32 %v1005, %v1010
    %1014 = vrot.lane.b32.xlu0 %v1012, 32
    %v1015 = vpop.permute.xlu0 %1014
    %v1017 = vadd.f32 %v1007, %v1015
    %v1018 = vtanh.pop %v1017
    %1020 = vrot.lane.b32.xlu0 %v1018, 64
    %v1021 = vpop.permute.xlu0 %1020
    %v1023 = vmul.f32 %v1005, %v1021
    %1025 = vrot.lane.b32.xlu0 %v1023, 32
    %v1026 = vpop.permute.xlu0 %1025
    %1028 = vst.msk [vmem:[#allocation3 + $0x6] sm:$0x3] %vm367, %v1026
    %v1029 = vld [vmem:[#allocation7 + $0x30] sm:$0xff]
    %v1030 = vld [vmem:[#allocation7 + $0x38] sm:$0xff]
    %v1031 = vld [vmem:[#allocation7 + $0x40] sm:$0xff]
    %v1032 = vld [vmem:[#allocation7 + $0x48] sm:$0xff]
    %v1033 = vld [vmem:[#allocation2 + $0x8] sm:$0x3]
    %v1034 = vsel %vm153, %v921, 0
    %1036 = vmatprep.subr.mxu0 0.0
    %1037 = vmatpush1.msra.mxu0 %v1029
    %1038 = vmatprep.subr.mxu0 0.0
    %1039 = vmatpush1.msra.mxu0 %v1030
    %1040 = vmatprep.subr.mxu0 0.0
    %1041 = vmatpush1.msra.mxu0 %v1031
    %1042 = vmatprep.subr.mxu0 0.0
    %1043 = vmatpush1.msra.mxu0 %v1032
    %1044 = vmatprep.subr.mxu0 0.0
    %1045 = vmatpush1.msra.mxu0 0.0
    %1046 = vmatprep.subr.mxu0 0.0
    %1047 = vmatpush1.msra.mxu0 0.0
    %1048 = vmatprep.subr.mxu0 0.0
    %1049 = vmatpush1.msra.mxu0 0.0
    %1050 = vmatprep.subr.mxu0 0.0
    %1051 = vmatpush1.msra.mxu0 0.0
    %1052 = vmatprep.subr.mxu0 0.0
    %1053 = vmatpush1.msra.mxu0 0.0
    %1054 = vmatprep.subr.mxu0 0.0
    %1055 = vmatpush1.msra.mxu0 0.0
    %1056 = vmatprep.subr.mxu0 0.0
    %1057 = vmatpush1.msra.mxu0 0.0
    %1058 = vmatprep.subr.mxu0 0.0
    %1059 = vmatpush1.msra.mxu0 0.0
    %1060 = vmatprep.subr.mxu0 0.0
    %1061 = vmatpush1.msra.mxu0 0.0
    %1062 = vmatprep.subr.mxu0 0.0
    %1063 = vmatpush1.msra.mxu0 0.0
    %1064 = vmatprep.subr.mxu0 0.0
    %1065 = vmatpush1.msra.mxu0 0.0
    %1066 = vmatprep.subr.mxu0 0.0
    %1067 = vmatpush1.msra.mxu0 0.0
    %1068 = vmatprep.subr.mxu0 0.0
    %1069 = vmatpush1.msra.mxu0 0.0
    %1070 = vmatprep.subr.mxu0 0.0
    %1071 = vmatpush1.msra.mxu0 0.0
    %1072 = vmatprep.subr.mxu0 0.0
    %1073 = vmatpush1.msra.mxu0 0.0
    %1074 = vmatprep.subr.mxu0 0.0
    %1075 = vmatpush1.msra.mxu0 0.0
    %1076 = vmatprep.subr.mxu0 0.0
    %1077 = vmatpush1.msra.mxu0 0.0
    %1078 = vmatprep.subr.mxu0 0.0
    %1079 = vmatpush1.msra.mxu0 0.0
    %1080 = vmatprep.subr.mxu0 0.0
    %1081 = vmatpush1.msra.mxu0 0.0
    %1082 = vmatprep.subr.mxu0 0.0
    %1083 = vmatpush1.msra.mxu0 0.0
    %1084 = vmatprep.subr.mxu0 0.0
    %1085 = vmatpush1.msra.mxu0 0.0
    %1086 = vmatprep.subr.mxu0 0.0
    %1087 = vmatpush1.msra.mxu0 0.0
    %1088 = vmatprep.subr.mxu0 0.0
    %1089 = vmatpush1.msra.mxu0 0.0
    %1090 = vmatprep.subr.mxu0 0.0
    %1091 = vmatpush1.msra.mxu0 0.0
    %1092 = vmatprep.subr.mxu0 0.0
    %1093 = vmatpush1.msra.mxu0 0.0
    %1094 = vmatprep.subr.mxu0 0.0
    %1095 = vmatpush1.msra.mxu0 0.0
    %1096 = vmatprep.subr.mxu0 0.0
    %1097 = vmatpush1.msra.mxu0 0.0
    %1098 = vmatprep.subr.mxu0 0.0
    %1099 = vmatpush1.msra.mxu0 0.0
    %1100 = vmatprep.mubr.f32.mxu0 0.0
    %1101 = vmatmul.mubr.f32.gmra.mrb[0].mxu0 %v1034
    %v1102 = vpop.f32.mrb[0].mxu0
    %v1103 = vadd.f32 0.0, %v1102
    %v1104 = vpop.f32.mrb[0].mxu0
    %1105 = vdwg.mxu0
    %v1106 = vadd.f32 %v1033, %v1103
    %v1107 = vxor.u32 %v1106, 2147483648
    %v1108 = vmul.f32 %v1107, 1.442695
    %v1109 = vpow.pop %v1108
    %v1110 = vadd.f32 %v1109, 1.0
    %v1111 = vrcp.pop %v1110
    %v1112 = vmul.f32 1.0, %v1111
    %v1113 = vtanh.pop %v1106
    %v1114 = vmul.f32 %v1112, %v904
    %1116 = vrot.lane.b32.xlu0 %v1113, 64
    %v1117 = vpop.permute.xlu0 %1116
    %v1119 = vmul.f32 %v1112, %v1117
    %1121 = vrot.lane.b32.xlu0 %v1119, 32
    %v1122 = vpop.permute.xlu0 %1121
    %v1124 = vadd.f32 %v1114, %v1122
    %v1125 = vtanh.pop %v1124
    %1127 = vrot.lane.b32.xlu0 %v1125, 64
    %v1128 = vpop.permute.xlu0 %1127
    %v1130 = vmul.f32 %v1112, %v1128
    %v1131 = vld [vmem:[%s2] sm:$0xff]
    %v1132 = vld [vmem:[%s2 + $0x8] sm:$0xff]
    %v1133 = vld [vmem:[%s2 + $0x10] sm:$0xff]
    %v1134 = vld [vmem:[%s2 + $0x18] sm:$0xff]
    %v1135 = vld [vmem:[%s2 + $0x20] sm:$0xff]
    %v1136 = vld [vmem:[%s2 + $0x28] sm:$0xff]
    %v1137 = vld [vmem:[%s2 + $0x30] sm:$0xff]
    %v1138 = vld [vmem:[%s2 + $0x38] sm:$0xff]
    %1140 = vrot.lane.b32.xlu0 %v1130, 32
    %v1141 = vpop.permute.xlu0 %1140
    %1143 = vrot.lane.b32.xlu0 %v1023, 64
    %v1144 = vpop.permute.xlu0 %1143
    %v1146 = vsel %vm153, %v1141, %v1144
    %v1148 = vsel %vm265, %v1146, 0
    %1150 = vmatprep.subr.mxu0 0.0
    %1151 = vmatpush1.msra.mxu0 %v1131
    %1152 = vmatprep.subr.mxu0 0.0
    %1153 = vmatpush1.msra.mxu0 %v1132
    %1154 = vmatprep.subr.mxu0 0.0
    %1155 = vmatpush1.msra.mxu0 %v1133
    %1156 = vmatprep.subr.mxu0 0.0
    %1157 = vmatpush1.msra.mxu0 %v1134
    %1158 = vmatprep.subr.mxu0 0.0
    %1159 = vmatpush1.msra.mxu0 %v1135
    %1160 = vmatprep.subr.mxu0 0.0
    %1161 = vmatpush1.msra.mxu0 %v1136
    %1162 = vmatprep.subr.mxu0 0.0
    %1163 = vmatpush1.msra.mxu0 %v1137
    %1164 = vmatprep.subr.mxu0 0.0
    %1165 = vmatpush1.msra.mxu0 %v1138
    %1166 = vmatprep.subr.mxu0 0.0
    %1167 = vmatpush1.msra.mxu0 0.0
    %1168 = vmatprep.subr.mxu0 0.0
    %1169 = vmatpush1.msra.mxu0 0.0
    %1170 = vmatprep.subr.mxu0 0.0
    %1171 = vmatpush1.msra.mxu0 0.0
    %1172 = vmatprep.subr.mxu0 0.0
    %1173 = vmatpush1.msra.mxu0 0.0
    %1174 = vmatprep.subr.mxu0 0.0
    %1175 = vmatpush1.msra.mxu0 0.0
    %1176 = vmatprep.subr.mxu0 0.0
    %1177 = vmatpush1.msra.mxu0 0.0
    %1178 = vmatprep.subr.mxu0 0.0
    %1179 = vmatpush1.msra.mxu0 0.0
    %1180 = vmatprep.subr.mxu0 0.0
    %1181 = vmatpush1.msra.mxu0 0.0
    %1182 = vmatprep.subr.mxu0 0.0
    %1183 = vmatpush1.msra.mxu0 0.0
    %1184 = vmatprep.subr.mxu0 0.0
    %1185 = vmatpush1.msra.mxu0 0.0
    %1186 = vmatprep.subr.mxu0 0.0
    %1187 = vmatpush1.msra.mxu0 0.0
    %1188 = vmatprep.subr.mxu0 0.0
    %1189 = vmatpush1.msra.mxu0 0.0
    %1190 = vmatprep.subr.mxu0 0.0
    %1191 = vmatpush1.msra.mxu0 0.0
    %1192 = vmatprep.subr.mxu0 0.0
    %1193 = vmatpush1.msra.mxu0 0.0
    %1194 = vmatprep.subr.mxu0 0.0
    %1195 = vmatpush1.msra.mxu0 0.0
    %1196 = vmatprep.subr.mxu0 0.0
    %1197 = vmatpush1.msra.mxu0 0.0
    %1198 = vmatprep.subr.mxu0 0.0
    %1199 = vmatpush1.msra.mxu0 0.0
    %1200 = vmatprep.subr.mxu0 0.0
    %1201 = vmatpush1.msra.mxu0 0.0
    %1202 = vmatprep.subr.mxu0 0.0
    %1203 = vmatpush1.msra.mxu0 0.0
    %1204 = vmatprep.subr.mxu0 0.0
    %1205 = vmatpush1.msra.mxu0 0.0
    %1206 = vmatprep.subr.mxu0 0.0
    %1207 = vmatpush1.msra.mxu0 0.0
    %1208 = vmatprep.subr.mxu0 0.0
    %1209 = vmatpush1.msra.mxu0 0.0
    %1210 = vmatprep.subr.mxu0 0.0
    %1211 = vmatpush1.msra.mxu0 0.0
    %1212 = vmatprep.subr.mxu0 0.0
    %1213 = vmatpush1.msra.mxu0 0.0
    %1214 = vmatprep.mubr.f32.mxu0 0.0
    %1215 = vmatmul.mubr.f32.gmra.mrb[0].mxu0 %v1148
    %v1216 = vpop.f32.mrb[0].mxu0
    %v1217 = vadd.f32 %v147, %v1216
    %v1218 = vpop.f32.mrb[0].mxu0
    %1219 = vdwg.mxu0
    %v1220 = vxor.u32 %v1217, 2147483648
    %v1221 = vmul.f32 %v1220, 1.442695
    %v1222 = vpow.pop %v1221
    %v1223 = vadd.f32 %v1222, 1.0
    %v1224 = vrcp.pop %v1223
    %v1225 = vmul.f32 1.0, %v1224
    %v1226 = vtanh.pop %v1217
    %v1227 = vmul.f32 %v1225, %v1017
    %1229 = vrot.lane.b32.xlu0 %v1226, 64
    %v1230 = vpop.permute.xlu0 %1229
    %v1232 = vmul.f32 %v1225, %v1230
    %1234 = vrot.lane.b32.xlu0 %v1232, 32
    %v1235 = vpop.permute.xlu0 %1234
    %v1237 = vadd.f32 %v1227, %v1235
    %v1238 = vtanh.pop %v1237
    %1240 = vrot.lane.b32.xlu0 %v1238, 64
    %v1241 = vpop.permute.xlu0 %1240
    %v1243 = vmul.f32 %v1225, %v1241
    %1245 = vrot.lane.b32.xlu0 %v1243, 32
    %v1246 = vpop.permute.xlu0 %1245
    %1248 = vst.msk [vmem:[#allocation3 + $0x8] sm:$0x3] %vm367, %v1246
    %v1249 = vld [vmem:[#allocation7 + $0x30] sm:$0xff]
    %v1250 = vld [vmem:[#allocation7 + $0x38] sm:$0xff]
    %v1251 = vld [vmem:[#allocation7 + $0x40] sm:$0xff]
    %v1252 = vld [vmem:[#allocation7 + $0x48] sm:$0xff]
    %v1253 = vld [vmem:[#allocation2 + $0xa] sm:$0x3]
    %v1254 = vsel %vm153, %v1141, 0
    %1256 = vmatprep.subr.mxu0 0.0
    %1257 = vmatpush1.msra.mxu0 %v1249
    %1258 = vmatprep.subr.mxu0 0.0
    %1259 = vmatpush1.msra.mxu0 %v1250
    %1260 = vmatprep.subr.mxu0 0.0
    %1261 = vmatpush1.msra.mxu0 %v1251
    %1262 = vmatprep.subr.mxu0 0.0
    %1263 = vmatpush1.msra.mxu0 %v1252
    %1264 = vmatprep.subr.mxu0 0.0
    %1265 = vmatpush1.msra.mxu0 0.0
    %1266 = vmatprep.subr.mxu0 0.0
    %1267 = vmatpush1.msra.mxu0 0.0
    %1268 = vmatprep.subr.mxu0 0.0
    %1269 = vmatpush1.msra.mxu0 0.0
    %1270 = vmatprep.subr.mxu0 0.0
    %1271 = vmatpush1.msra.mxu0 0.0
    %1272 = vmatprep.subr.mxu0 0.0
    %1273 = vmatpush1.msra.mxu0 0.0
    %1274 = vmatprep.subr.mxu0 0.0
    %1275 = vmatpush1.msra.mxu0 0.0
    %1276 = vmatprep.subr.mxu0 0.0
    %1277 = vmatpush1.msra.mxu0 0.0
    %1278 = vmatprep.subr.mxu0 0.0
    %1279 = vmatpush1.msra.mxu0 0.0
    %1280 = vmatprep.subr.mxu0 0.0
    %1281 = vmatpush1.msra.mxu0 0.0
    %1282 = vmatprep.subr.mxu0 0.0
    %1283 = vmatpush1.msra.mxu0 0.0
    %1284 = vmatprep.subr.mxu0 0.0
    %1285 = vmatpush1.msra.mxu0 0.0
    %1286 = vmatprep.subr.mxu0 0.0
    %1287 = vmatpush1.msra.mxu0 0.0
    %1288 = vmatprep.subr.mxu0 0.0
    %1289 = vmatpush1.msra.mxu0 0.0
    %1290 = vmatprep.subr.mxu0 0.0
    %1291 = vmatpush1.msra.mxu0 0.0
    %1292 = vmatprep.subr.mxu0 0.0
    %1293 = vmatpush1.msra.mxu0 0.0
    %1294 = vmatprep.subr.mxu0 0.0
    %1295 = vmatpush1.msra.mxu0 0.0
    %1296 = vmatprep.subr.mxu0 0.0
    %1297 = vmatpush1.msra.mxu0 0.0
    %1298 = vmatprep.subr.mxu0 0.0
    %1299 = vmatpush1.msra.mxu0 0.0
    %1300 = vmatprep.subr.mxu0 0.0
    %1301 = vmatpush1.msra.mxu0 0.0
    %1302 = vmatprep.subr.mxu0 0.0
    %1303 = vmatpush1.msra.mxu0 0.0
    %1304 = vmatprep.subr.mxu0 0.0
    %1305 = vmatpush1.msra.mxu0 0.0
    %1306 = vmatprep.subr.mxu0 0.0
    %1307 = vmatpush1.msra.mxu0 0.0
    %1308 = vmatprep.subr.mxu0 0.0
    %1309 = vmatpush1.msra.mxu0 0.0
    %1310 = vmatprep.subr.mxu0 0.0
    %1311 = vmatpush1.msra.mxu0 0.0
    %1312 = vmatprep.subr.mxu0 0.0
    %1313 = vmatpush1.msra.mxu0 0.0
    %1314 = vmatprep.subr.mxu0 0.0
    %1315 = vmatpush1.msra.mxu0 0.0
    %1316 = vmatprep.subr.mxu0 0.0
    %1317 = vmatpush1.msra.mxu0 0.0
    %1318 = vmatprep.subr.mxu0 0.0
    %1319 = vmatpush1.msra.mxu0 0.0
    %1320 = vmatprep.mubr.f32.mxu0 0.0
    %1321 = vmatmul.mubr.f32.gmra.mrb[0].mxu0 %v1254
    %v1322 = vpop.f32.mrb[0].mxu0
    %v1323 = vadd.f32 0.0, %v1322
    %v1324 = vpop.f32.mrb[0].mxu0
    %1325 = vdwg.mxu0
    %v1326 = vadd.f32 %v1253, %v1323
    %v1327 = vxor.u32 %v1326, 2147483648
    %v1328 = vmul.f32 %v1327, 1.442695
    %v1329 = vpow.pop %v1328
    %v1330 = vadd.f32 %v1329, 1.0
    %v1331 = vrcp.pop %v1330
    %v1332 = vmul.f32 1.0, %v1331
    %v1333 = vtanh.pop %v1326
    %v1334 = vmul.f32 %v1332, %v1124
    %1336 = vrot.lane.b32.xlu0 %v1333, 64
    %v1337 = vpop.permute.xlu0 %1336
    %v1339 = vmul.f32 %v1332, %v1337
    %1341 = vrot.lane.b32.xlu0 %v1339, 32
    %v1342 = vpop.permute.xlu0 %1341
    %v1344 = vadd.f32 %v1334, %v1342
    %v1345 = vtanh.pop %v1344
    %1347 = vrot.lane.b32.xlu0 %v1345, 64
    %v1348 = vpop.permute.xlu0 %1347
    %v1350 = vmul.f32 %v1332, %v1348
    %v1351 = vld [vmem:[%s2] sm:$0xff]
    %v1352 = vld [vmem:[%s2 + $0x8] sm:$0xff]
    %v1353 = vld [vmem:[%s2 + $0x10] sm:$0xff]
    %v1354 = vld [vmem:[%s2 + $0x18] sm:$0xff]
    %v1355 = vld [vmem:[%s2 + $0x20] sm:$0xff]
    %v1356 = vld [vmem:[%s2 + $0x28] sm:$0xff]
    %v1357 = vld [vmem:[%s2 + $0x30] sm:$0xff]
    %v1358 = vld [vmem:[%s2 + $0x38] sm:$0xff]
    %1360 = vrot.lane.b32.xlu0 %v1350, 32
    %v1361 = vpop.permute.xlu0 %1360
    %1363 = vrot.lane.b32.xlu0 %v1243, 64
    %v1364 = vpop.permute.xlu0 %1363
    %v1366 = vsel %vm153, %v1361, %v1364
    %v1368 = vsel %vm265, %v1366, 0
    %1370 = vmatprep.subr.mxu0 0.0
    %1371 = vmatpush1.msra.mxu0 %v1351
    %1372 = vmatprep.subr.mxu0 0.0
    %1373 = vmatpush1.msra.mxu0 %v1352
    %1374 = vmatprep.subr.mxu0 0.0
    %1375 = vmatpush1.msra.mxu0 %v1353
    %1376 = vmatprep.subr.mxu0 0.0
    %1377 = vmatpush1.msra.mxu0 %v1354
    %1378 = vmatprep.subr.mxu0 0.0
    %1379 = vmatpush1.msra.mxu0 %v1355
    %1380 = vmatprep.subr.mxu0 0.0
    %1381 = vmatpush1.msra.mxu0 %v1356
    %1382 = vmatprep.subr.mxu0 0.0
    %1383 = vmatpush1.msra.mxu0 %v1357
    %1384 = vmatprep.subr.mxu0 0.0
    %1385 = vmatpush1.msra.mxu0 %v1358
    %1386 = vmatprep.subr.mxu0 0.0
    %1387 = vmatpush1.msra.mxu0 0.0
    %1388 = vmatprep.subr.mxu0 0.0
    %1389 = vmatpush1.msra.mxu0 0.0
    %1390 = vmatprep.subr.mxu0 0.0
    %1391 = vmatpush1.msra.mxu0 0.0
    %1392 = vmatprep.subr.mxu0 0.0
    %1393 = vmatpush1.msra.mxu0 0.0
    %1394 = vmatprep.subr.mxu0 0.0
    %1395 = vmatpush1.msra.mxu0 0.0
    %1396 = vmatprep.subr.mxu0 0.0
    %1397 = vmatpush1.msra.mxu0 0.0
    %1398 = vmatprep.subr.mxu0 0.0
    %1399 = vmatpush1.msra.mxu0 0.0
    %1400 = vmatprep.subr.mxu0 0.0
    %1401 = vmatpush1.msra.mxu0 0.0
    %1402 = vmatprep.subr.mxu0 0.0
    %1403 = vmatpush1.msra.mxu0 0.0
    %1404 = vmatprep.subr.mxu0 0.0
    %1405 = vmatpush1.msra.mxu0 0.0
    %1406 = vmatprep.subr.mxu0 0.0
    %1407 = vmatpush1.msra.mxu0 0.0
    %1408 = vmatprep.subr.mxu0 0.0
    %1409 = vmatpush1.msra.mxu0 0.0
    %1410 = vmatprep.subr.mxu0 0.0
    %1411 = vmatpush1.msra.mxu0 0.0
    %1412 = vmatprep.subr.mxu0 0.0
    %1413 = vmatpush1.msra.mxu0 0.0
    %1414 = vmatprep.subr.mxu0 0.0
    %1415 = vmatpush1.msra.mxu0 0.0
    %1416 = vmatprep.subr.mxu0 0.0
    %1417 = vmatpush1.msra.mxu0 0.0
    %1418 = vmatprep.subr.mxu0 0.0
    %1419 = vmatpush1.msra.mxu0 0.0
    %1420 = vmatprep.subr.mxu0 0.0
    %1421 = vmatpush1.msra.mxu0 0.0
    %1422 = vmatprep.subr.mxu0 0.0
    %1423 = vmatpush1.msra.mxu0 0.0
    %1424 = vmatprep.subr.mxu0 0.0
    %1425 = vmatpush1.msra.mxu0 0.0
    %1426 = vmatprep.subr.mxu0 0.0
    %1427 = vmatpush1.msra.mxu0 0.0
    %1428 = vmatprep.subr.mxu0 0.0
    %1429 = vmatpush1.msra.mxu0 0.0
    %1430 = vmatprep.subr.mxu0 0.0
    %1431 = vmatpush1.msra.mxu0 0.0
    %1432 = vmatprep.subr.mxu0 0.0
    %1433 = vmatpush1.msra.mxu0 0.0
    %1434 = vmatprep.mubr.f32.mxu0 0.0
    %1435 = vmatmul.mubr.f32.gmra.mrb[0].mxu0 %v1368
    %v1436 = vpop.f32.mrb[0].mxu0
    %v1437 = vadd.f32 %v147, %v1436
    %v1438 = vpop.f32.mrb[0].mxu0
    %1439 = vdwg.mxu0
    %v1440 = vxor.u32 %v1437, 2147483648
    %v1441 = vmul.f32 %v1440, 1.442695
    %v1442 = vpow.pop %v1441
    %v1443 = vadd.f32 %v1442, 1.0
    %v1444 = vrcp.pop %v1443
    %v1445 = vmul.f32 1.0, %v1444
    %v1446 = vtanh.pop %v1437
    %v1447 = vmul.f32 %v1445, %v1237
    %1449 = vrot.lane.b32.xlu0 %v1446, 64
    %v1450 = vpop.permute.xlu0 %1449
    %v1452 = vmul.f32 %v1445, %v1450
    %1454 = vrot.lane.b32.xlu0 %v1452, 32
    %v1455 = vpop.permute.xlu0 %1454
    %v1457 = vadd.f32 %v1447, %v1455
    %v1458 = vtanh.pop %v1457
    %1460 = vrot.lane.b32.xlu0 %v1458, 64
    %v1461 = vpop.permute.xlu0 %1460
    %v1463 = vmul.f32 %v1445, %v1461
    %1465 = vrot.lane.b32.xlu0 %v1463, 32
    %v1466 = vpop.permute.xlu0 %1465
    %1468 = vst.msk [vmem:[#allocation3 + $0xa] sm:$0x3] %vm367, %v1466
    %v1469 = vld [vmem:[#allocation7 + $0x30] sm:$0xff]
    %v1470 = vld [vmem:[#allocation7 + $0x38] sm:$0xff]
    %v1471 = vld [vmem:[#allocation7 + $0x40] sm:$0xff]
    %v1472 = vld [vmem:[#allocation7 + $0x48] sm:$0xff]
    %v1473 = vld [vmem:[#allocation2 + $0xc] sm:$0x3]
    %v1474 = vsel %vm153, %v1361, 0
    %1476 = vmatprep.subr.mxu0 0.0
    %1477 = vmatpush1.msra.mxu0 %v1469
    %1478 = vmatprep.subr.mxu0 0.0
    %1479 = vmatpush1.msra.mxu0 %v1470
    %1480 = vmatprep.subr.mxu0 0.0
    %1481 = vmatpush1.msra.mxu0 %v1471
    %1482 = vmatprep.subr.mxu0 0.0
    %1483 = vmatpush1.msra.mxu0 %v1472
    %1484 = vmatprep.subr.mxu0 0.0
    %1485 = vmatpush1.msra.mxu0 0.0
    %1486 = vmatprep.subr.mxu0 0.0
    %1487 = vmatpush1.msra.mxu0 0.0
    %1488 = vmatprep.subr.mxu0 0.0
    %1489 = vmatpush1.msra.mxu0 0.0
    %1490 = vmatprep.subr.mxu0 0.0
    %1491 = vmatpush1.msra.mxu0 0.0
    %1492 = vmatprep.subr.mxu0 0.0
    %1493 = vmatpush1.msra.mxu0 0.0
    %1494 = vmatprep.subr.mxu0 0.0
    %1495 = vmatpush1.msra.mxu0 0.0
    %1496 = vmatprep.subr.mxu0 0.0
    %1497 = vmatpush1.msra.mxu0 0.0
    %1498 = vmatprep.subr.mxu0 0.0
    %1499 = vmatpush1.msra.mxu0 0.0
    %1500 = vmatprep.subr.mxu0 0.0
    %1501 = vmatpush1.msra.mxu0 0.0
    %1502 = vmatprep.subr.mxu0 0.0
    %1503 = vmatpush1.msra.mxu0 0.0
    %1504 = vmatprep.subr.mxu0 0.0
    %1505 = vmatpush1.msra.mxu0 0.0
    %1506 = vmatprep.subr.mxu0 0.0
    %1507 = vmatpush1.msra.mxu0 0.0
    %1508 = vmatprep.subr.mxu0 0.0
    %1509 = vmatpush1.msra.mxu0 0.0
    %1510 = vmatprep.subr.mxu0 0.0
    %1511 = vmatpush1.msra.mxu0 0.0
    %1512 = vmatprep.subr.mxu0 0.0
    %1513 = vmatpush1.msra.mxu0 0.0
    %1514 = vmatprep.subr.mxu0 0.0
    %1515 = vmatpush1.msra.mxu0 0.0
    %1516 = vmatprep.subr.mxu0 0.0
    %1517 = vmatpush1.msra.mxu0 0.0
    %1518 = vmatprep.subr.mxu0 0.0
    %1519 = vmatpush1.msra.mxu0 0.0
    %1520 = vmatprep.subr.mxu0 0.0
    %1521 = vmatpush1.msra.mxu0 0.0
    %1522 = vmatprep.subr.mxu0 0.0
    %1523 = vmatpush1.msra.mxu0 0.0
    %1524 = vmatprep.subr.mxu0 0.0
    %1525 = vmatpush1.msra.mxu0 0.0
    %1526 = vmatprep.subr.mxu0 0.0
    %1527 = vmatpush1.msra.mxu0 0.0
    %1528 = vmatprep.subr.mxu0 0.0
    %1529 = vmatpush1.msra.mxu0 0.0
    %1530 = vmatprep.subr.mxu0 0.0
    %1531 = vmatpush1.msra.mxu0 0.0
    %1532 = vmatprep.subr.mxu0 0.0
    %1533 = vmatpush1.msra.mxu0 0.0
    %1534 = vmatprep.subr.mxu0 0.0
    %1535 = vmatpush1.msra.mxu0 0.0
    %1536 = vmatprep.subr.mxu0 0.0
    %1537 = vmatpush1.msra.mxu0 0.0
    %1538 = vmatprep.subr.mxu0 0.0
    %1539 = vmatpush1.msra.mxu0 0.0
    %1540 = vmatprep.mubr.f32.mxu0 0.0
    %1541 = vmatmul.mubr.f32.gmra.mrb[0].mxu0 %v1474
    %v1542 = vpop.f32.mrb[0].mxu0
    %v1543 = vadd.f32 0.0, %v1542
    %v1544 = vpop.f32.mrb[0].mxu0
    %1545 = vdwg.mxu0
    %v1546 = vadd.f32 %v1473, %v1543
    %v1547 = vxor.u32 %v1546, 2147483648
    %v1548 = vmul.f32 %v1547, 1.442695
    %v1549 = vpow.pop %v1548
    %v1550 = vadd.f32 %v1549, 1.0
    %v1551 = vrcp.pop %v1550
    %v1552 = vmul.f32 1.0, %v1551
    %v1553 = vtanh.pop %v1546
    %v1554 = vmul.f32 %v1552, %v1344
    %1556 = vrot.lane.b32.xlu0 %v1553, 64
    %v1557 = vpop.permute.xlu0 %1556
    %v1559 = vmul.f32 %v1552, %v1557
    %1561 = vrot.lane.b32.xlu0 %v1559, 32
    %v1562 = vpop.permute.xlu0 %1561
    %v1564 = vadd.f32 %v1554, %v1562
    %v1565 = vtanh.pop %v1564
    %1567 = vrot.lane.b32.xlu0 %v1565, 64
    %v1568 = vpop.permute.xlu0 %1567
    %v1570 = vmul.f32 %v1552, %v1568
    %v1571 = vld [vmem:[%s2] sm:$0xff]
    %v1572 = vld [vmem:[%s2 + $0x8] sm:$0xff]
    %v1573 = vld [vmem:[%s2 + $0x10] sm:$0xff]
    %v1574 = vld [vmem:[%s2 + $0x18] sm:$0xff]
    %v1575 = vld [vmem:[%s2 + $0x20] sm:$0xff]
    %v1576 = vld [vmem:[%s2 + $0x28] sm:$0xff]
    %v1577 = vld [vmem:[%s2 + $0x30] sm:$0xff]
    %v1578 = vld [vmem:[%s2 + $0x38] sm:$0xff]
    %1580 = vrot.lane.b32.xlu0 %v1570, 32
    %v1581 = vpop.permute.xlu0 %1580
    %1583 = vrot.lane.b32.xlu0 %v1463, 64
    %v1584 = vpop.permute.xlu0 %1583
    %v1586 = vsel %vm153, %v1581, %v1584
    %v1588 = vsel %vm265, %v1586, 0
    %1590 = vmatprep.subr.mxu0 0.0
    %1591 = vmatpush1.msra.mxu0 %v1571
    %1592 = vmatprep.subr.mxu0 0.0
    %1593 = vmatpush1.msra.mxu0 %v1572
    %1594 = vmatprep.subr.mxu0 0.0
    %1595 = vmatpush1.msra.mxu0 %v1573
    %1596 = vmatprep.subr.mxu0 0.0
    %1597 = vmatpush1.msra.mxu0 %v1574
    %1598 = vmatprep.subr.mxu0 0.0
    %1599 = vmatpush1.msra.mxu0 %v1575
    %1600 = vmatprep.subr.mxu0 0.0
    %1601 = vmatpush1.msra.mxu0 %v1576
    %1602 = vmatprep.subr.mxu0 0.0
    %1603 = vmatpush1.msra.mxu0 %v1577
    %1604 = vmatprep.subr.mxu0 0.0
    %1605 = vmatpush1.msra.mxu0 %v1578
    %1606 = vmatprep.subr.mxu0 0.0
    %1607 = vmatpush1.msra.mxu0 0.0
    %1608 = vmatprep.subr.mxu0 0.0
    %1609 = vmatpush1.msra.mxu0 0.0
    %1610 = vmatprep.subr.mxu0 0.0
    %1611 = vmatpush1.msra.mxu0 0.0
    %1612 = vmatprep.subr.mxu0 0.0
    %1613 = vmatpush1.msra.mxu0 0.0
    %1614 = vmatprep.subr.mxu0 0.0
    %1615 = vmatpush1.msra.mxu0 0.0
    %1616 = vmatprep.subr.mxu0 0.0
    %1617 = vmatpush1.msra.mxu0 0.0
    %1618 = vmatprep.subr.mxu0 0.0
    %1619 = vmatpush1.msra.mxu0 0.0
    %1620 = vmatprep.subr.mxu0 0.0
    %1621 = vmatpush1.msra.mxu0 0.0
    %1622 = vmatprep.subr.mxu0 0.0
    %1623 = vmatpush1.msra.mxu0 0.0
    %1624 = vmatprep.subr.mxu0 0.0
    %1625 = vmatpush1.msra.mxu0 0.0
    %1626 = vmatprep.subr.mxu0 0.0
    %1627 = vmatpush1.msra.mxu0 0.0
    %1628 = vmatprep.subr.mxu0 0.0
    %1629 = vmatpush1.msra.mxu0 0.0
    %1630 = vmatprep.subr.mxu0 0.0
    %1631 = vmatpush1.msra.mxu0 0.0
    %1632 = vmatprep.subr.mxu0 0.0
    %1633 = vmatpush1.msra.mxu0 0.0
    %1634 = vmatprep.subr.mxu0 0.0
    %1635 = vmatpush1.msra.mxu0 0.0
    %1636 = vmatprep.subr.mxu0 0.0
    %1637 = vmatpush1.msra.mxu0 0.0
    %1638 = vmatprep.subr.mxu0 0.0
    %1639 = vmatpush1.msra.mxu0 0.0
    %1640 = vmatprep.subr.mxu0 0.0
    %1641 = vmatpush1.msra.mxu0 0.0
    %1642 = vmatprep.subr.mxu0 0.0
    %1643 = vmatpush1.msra.mxu0 0.0
    %1644 = vmatprep.subr.mxu0 0.0
    %1645 = vmatpush1.msra.mxu0 0.0
    %1646 = vmatprep.subr.mxu0 0.0
    %1647 = vmatpush1.msra.mxu0 0.0
    %1648 = vmatprep.subr.mxu0 0.0
    %1649 = vmatpush1.msra.mxu0 0.0
    %1650 = vmatprep.subr.mxu0 0.0
    %1651 = vmatpush1.msra.mxu0 0.0
    %1652 = vmatprep.subr.mxu0 0.0
    %1653 = vmatpush1.msra.mxu0 0.0
    %1654 = vmatprep.mubr.f32.mxu0 0.0
    %1655 = vmatmul.mubr.f32.gmra.mrb[0].mxu0 %v1588
    %v1656 = vpop.f32.mrb[0].mxu0
    %v1657 = vadd.f32 %v147, %v1656
    %v1658 = vpop.f32.mrb[0].mxu0
    %1659 = vdwg.mxu0
    %v1660 = vxor.u32 %v1657, 2147483648
    %v1661 = vmul.f32 %v1660, 1.442695
    %v1662 = vpow.pop %v1661
    %v1663 = vadd.f32 %v1662, 1.0
    %v1664 = vrcp.pop %v1663
    %v1665 = vmul.f32 1.0, %v1664
    %v1666 = vtanh.pop %v1657
    %v1667 = vmul.f32 %v1665, %v1457
    %1669 = vrot.lane.b32.xlu0 %v1666, 64
    %v1670 = vpop.permute.xlu0 %1669
    %v1672 = vmul.f32 %v1665, %v1670
    %1674 = vrot.lane.b32.xlu0 %v1672, 32
    %v1675 = vpop.permute.xlu0 %1674
    %v1677 = vadd.f32 %v1667, %v1675
    %v1678 = vtanh.pop %v1677
    %1680 = vrot.lane.b32.xlu0 %v1678, 64
    %v1681 = vpop.permute.xlu0 %1680
    %v1683 = vmul.f32 %v1665, %v1681
    %1685 = vrot.lane.b32.xlu0 %v1683, 32
    %v1686 = vpop.permute.xlu0 %1685
    %1688 = vst.msk [vmem:[#allocation3 + $0xc] sm:$0x3] %vm367, %v1686
    %v1689 = vld [vmem:[#allocation7 + $0x30] sm:$0xff]
    %v1690 = vld [vmem:[#allocation7 + $0x38] sm:$0xff]
    %v1691 = vld [vmem:[#allocation7 + $0x40] sm:$0xff]
    %v1692 = vld [vmem:[#allocation7 + $0x48] sm:$0xff]
    %v1693 = vld [vmem:[#allocation2 + $0xe] sm:$0x3]
    %v1694 = vsel %vm153, %v1581, 0
    %1696 = vmatprep.subr.mxu0 0.0
    %1697 = vmatpush1.msra.mxu0 %v1689
    %1698 = vmatprep.subr.mxu0 0.0
    %1699 = vmatpush1.msra.mxu0 %v1690
    %1700 = vmatprep.subr.mxu0 0.0
    %1701 = vmatpush1.msra.mxu0 %v1691
    %1702 = vmatprep.subr.mxu0 0.0
    %1703 = vmatpush1.msra.mxu0 %v1692
    %1704 = vmatprep.subr.mxu0 0.0
    %1705 = vmatpush1.msra.mxu0 0.0
    %1706 = vmatprep.subr.mxu0 0.0
    %1707 = vmatpush1.msra.mxu0 0.0
    %1708 = vmatprep.subr.mxu0 0.0
    %1709 = vmatpush1.msra.mxu0 0.0
    %1710 = vmatprep.subr.mxu0 0.0
    %1711 = vmatpush1.msra.mxu0 0.0
    %1712 = vmatprep.subr.mxu0 0.0
    %1713 = vmatpush1.msra.mxu0 0.0
    %1714 = vmatprep.subr.mxu0 0.0
    %1715 = vmatpush1.msra.mxu0 0.0
    %1716 = vmatprep.subr.mxu0 0.0
    %1717 = vmatpush1.msra.mxu0 0.0
    %1718 = vmatprep.subr.mxu0 0.0
    %1719 = vmatpush1.msra.mxu0 0.0
    %1720 = vmatprep.subr.mxu0 0.0
    %1721 = vmatpush1.msra.mxu0 0.0
    %1722 = vmatprep.subr.mxu0 0.0
    %1723 = vmatpush1.msra.mxu0 0.0
    %1724 = vmatprep.subr.mxu0 0.0
    %1725 = vmatpush1.msra.mxu0 0.0
    %1726 = vmatprep.subr.mxu0 0.0
    %1727 = vmatpush1.msra.mxu0 0.0
    %1728 = vmatprep.subr.mxu0 0.0
    %1729 = vmatpush1.msra.mxu0 0.0
    %1730 = vmatprep.subr.mxu0 0.0
    %1731 = vmatpush1.msra.mxu0 0.0
    %1732 = vmatprep.subr.mxu0 0.0
    %1733 = vmatpush1.msra.mxu0 0.0
    %1734 = vmatprep.subr.mxu0 0.0
    %1735 = vmatpush1.msra.mxu0 0.0
    %1736 = vmatprep.subr.mxu0 0.0
    %1737 = vmatpush1.msra.mxu0 0.0
    %1738 = vmatprep.subr.mxu0 0.0
    %1739 = vmatpush1.msra.mxu0 0.0
    %1740 = vmatprep.subr.mxu0 0.0
    %1741 = vmatpush1.msra.mxu0 0.0
    %1742 = vmatprep.subr.mxu0 0.0
    %1743 = vmatpush1.msra.mxu0 0.0
    %1744 = vmatprep.subr.mxu0 0.0
    %1745 = vmatpush1.msra.mxu0 0.0
    %1746 = vmatprep.subr.mxu0 0.0
    %1747 = vmatpush1.msra.mxu0 0.0
    %1748 = vmatprep.subr.mxu0 0.0
    %1749 = vmatpush1.msra.mxu0 0.0
    %1750 = vmatprep.subr.mxu0 0.0
    %1751 = vmatpush1.msra.mxu0 0.0
    %1752 = vmatprep.subr.mxu0 0.0
    %1753 = vmatpush1.msra.mxu0 0.0
    %1754 = vmatprep.subr.mxu0 0.0
    %1755 = vmatpush1.msra.mxu0 0.0
    %1756 = vmatprep.subr.mxu0 0.0
    %1757 = vmatpush1.msra.mxu0 0.0
    %1758 = vmatprep.subr.mxu0 0.0
    %1759 = vmatpush1.msra.mxu0 0.0
    %1760 = vmatprep.mubr.f32.mxu0 0.0
    %1761 = vmatmul.mubr.f32.gmra.mrb[0].mxu0 %v1694
    %v1762 = vpop.f32.mrb[0].mxu0
    %v1763 = vadd.f32 0.0, %v1762
    %v1764 = vpop.f32.mrb[0].mxu0
    %1765 = vdwg.mxu0
    %v1766 = vadd.f32 %v1693, %v1763
    %v1767 = vxor.u32 %v1766, 2147483648
    %v1768 = vmul.f32 %v1767, 1.442695
    %v1769 = vpow.pop %v1768
    %v1770 = vadd.f32 %v1769, 1.0
    %v1771 = vrcp.pop %v1770
    %v1772 = vmul.f32 1.0, %v1771
    %v1773 = vtanh.pop %v1766
    %v1774 = vmul.f32 %v1772, %v1564
    %1776 = vrot.lane.b32.xlu0 %v1773, 64
    %v1777 = vpop.permute.xlu0 %1776
    %v1779 = vmul.f32 %v1772, %v1777
    %1781 = vrot.lane.b32.xlu0 %v1779, 32
    %v1782 = vpop.permute.xlu0 %1781
    %v1784 = vadd.f32 %v1774, %v1782
    %v1785 = vtanh.pop %v1784
    %1787 = vrot.lane.b32.xlu0 %v1785, 64
    %v1788 = vpop.permute.xlu0 %1787
    %v1790 = vmul.f32 %v1772, %v1788
    %v1791 = vld [vmem:[%s2] sm:$0xff]
    %v1792 = vld [vmem:[%s2 + $0x8] sm:$0xff]
    %v1793 = vld [vmem:[%s2 + $0x10] sm:$0xff]
    %v1794 = vld [vmem:[%s2 + $0x18] sm:$0xff]
    %v1795 = vld [vmem:[%s2 + $0x20] sm:$0xff]
    %v1796 = vld [vmem:[%s2 + $0x28] sm:$0xff]
    %v1797 = vld [vmem:[%s2 + $0x30] sm:$0xff]
    %v1798 = vld [vmem:[%s2 + $0x38] sm:$0xff]
    %1800 = vrot.lane.b32.xlu0 %v1790, 32
    %v1801 = vpop.permute.xlu0 %1800
    %1803 = vrot.lane.b32.xlu0 %v1683, 64
    %v1804 = vpop.permute.xlu0 %1803
    %v1806 = vsel %vm153, %v1801, %v1804
    %v1808 = vsel %vm265, %v1806, 0
    %1810 = vmatprep.subr.mxu0 0.0
    %1811 = vmatpush1.msra.mxu0 %v1791
    %1812 = vmatprep.subr.mxu0 0.0
    %1813 = vmatpush1.msra.mxu0 %v1792
    %1814 = vmatprep.subr.mxu0 0.0
    %1815 = vmatpush1.msra.mxu0 %v1793
    %1816 = vmatprep.subr.mxu0 0.0
    %1817 = vmatpush1.msra.mxu0 %v1794
    %1818 = vmatprep.subr.mxu0 0.0
    %1819 = vmatpush1.msra.mxu0 %v1795
    %1820 = vmatprep.subr.mxu0 0.0
    %1821 = vmatpush1.msra.mxu0 %v1796
    %1822 = vmatprep.subr.mxu0 0.0
    %1823 = vmatpush1.msra.mxu0 %v1797
    %1824 = vmatprep.subr.mxu0 0.0
    %1825 = vmatpush1.msra.mxu0 %v1798
    %1826 = vmatprep.subr.mxu0 0.0
    %1827 = vmatpush1.msra.mxu0 0.0
    %1828 = vmatprep.subr.mxu0 0.0
    %1829 = vmatpush1.msra.mxu0 0.0
    %1830 = vmatprep.subr.mxu0 0.0
    %1831 = vmatpush1.msra.mxu0 0.0
    %1832 = vmatprep.subr.mxu0 0.0
    %1833 = vmatpush1.msra.mxu0 0.0
    %1834 = vmatprep.subr.mxu0 0.0
    %1835 = vmatpush1.msra.mxu0 0.0
    %1836 = vmatprep.subr.mxu0 0.0
    %1837 = vmatpush1.msra.mxu0 0.0
    %1838 = vmatprep.subr.mxu0 0.0
    %1839 = vmatpush1.msra.mxu0 0.0
    %1840 = vmatprep.subr.mxu0 0.0
    %1841 = vmatpush1.msra.mxu0 0.0
    %1842 = vmatprep.subr.mxu0 0.0
    %1843 = vmatpush1.msra.mxu0 0.0
    %1844 = vmatprep.subr.mxu0 0.0
    %1845 = vmatpush1.msra.mxu0 0.0
    %1846 = vmatprep.subr.mxu0 0.0
    %1847 = vmatpush1.msra.mxu0 0.0
    %1848 = vmatprep.subr.mxu0 0.0
    %1849 = vmatpush1.msra.mxu0 0.0
    %1850 = vmatprep.subr.mxu0 0.0
    %1851 = vmatpush1.msra.mxu0 0.0
    %1852 = vmatprep.subr.mxu0 0.0
    %1853 = vmatpush1.msra.mxu0 0.0
    %1854 = vmatprep.subr.mxu0 0.0
    %1855 = vmatpush1.msra.mxu0 0.0
    %1856 = vmatprep.subr.mxu0 0.0
    %1857 = vmatpush1.msra.mxu0 0.0
    %1858 = vmatprep.subr.mxu0 0.0
    %1859 = vmatpush1.msra.mxu0 0.0
    %1860 = vmatprep.subr.mxu0 0.0
    %1861 = vmatpush1.msra.mxu0 0.0
    %1862 = vmatprep.subr.mxu0 0.0
    %1863 = vmatpush1.msra.mxu0 0.0
    %1864 = vmatprep.subr.mxu0 0.0
    %1865 = vmatpush1.msra.mxu0 0.0
    %1866 = vmatprep.subr.mxu0 0.0
    %1867 = vmatpush1.msra.mxu0 0.0
    %1868 = vmatprep.subr.mxu0 0.0
    %1869 = vmatpush1.msra.mxu0 0.0
    %1870 = vmatprep.subr.mxu0 0.0
    %1871 = vmatpush1.msra.mxu0 0.0
    %1872 = vmatprep.subr.mxu0 0.0
    %1873 = vmatpush1.msra.mxu0 0.0
    %1874 = vmatprep.mubr.f32.mxu0 0.0
    %1875 = vmatmul.mubr.f32.gmra.mrb[0].mxu0 %v1808
    %v1876 = vpop.f32.mrb[0].mxu0
    %v1877 = vadd.f32 %v147, %v1876
    %v1878 = vpop.f32.mrb[0].mxu0
    %1879 = vdwg.mxu0
    %v1880 = vxor.u32 %v1877, 2147483648
    %v1881 = vmul.f32 %v1880, 1.442695
    %v1882 = vpow.pop %v1881
    %v1883 = vadd.f32 %v1882, 1.0
    %v1884 = vrcp.pop %v1883
    %v1885 = vmul.f32 1.0, %v1884
    %v1886 = vtanh.pop %v1877
    %v1887 = vmul.f32 %v1885, %v1677
    %1889 = vrot.lane.b32.xlu0 %v1886, 64
    %v1890 = vpop.permute.xlu0 %1889
    %v1892 = vmul.f32 %v1885, %v1890
    %1894 = vrot.lane.b32.xlu0 %v1892, 32
    %v1895 = vpop.permute.xlu0 %1894
    %v1897 = vadd.f32 %v1887, %v1895
    %v1898 = vtanh.pop %v1897
    %1900 = vrot.lane.b32.xlu0 %v1898, 64
    %v1901 = vpop.permute.xlu0 %1900
    %v1903 = vmul.f32 %v1885, %v1901
    %1905 = vrot.lane.b32.xlu0 %v1903, 32
    %v1906 = vpop.permute.xlu0 %1905
    %1908 = vst.msk [vmem:[#allocation3 + $0xe] sm:$0x3] %vm367, %v1906
    %v1909 = vld [vmem:[#allocation3] sm:$0xff]
    %v1910 = vld [vmem:[#allocation3 + $0x8] sm:$0xff]
    %v1911 = vld [vmem:[%s3] sm:$0xff]
    %v1912 = vld [vmem:[%s3 + $0x8] sm:$0xff]
    %v1913 = vld [vmem:[%s3 + $0x10] sm:$0xff]
    %v1914 = vld [vmem:[%s3 + $0x18] sm:$0xff]
    %v1915 = vld [vmem:[%s3 + $0x20] sm:$0x1]
    %v1916 = vlaneseq
    %v1917 = vshrl.u32 %v1916, 7
    %v1918 = vsub.s32 0, %v1917
    %v1919 = vrot.slane %v1915, %v1918
    %v1921 = vsel %vm153, %v1909, 0
    %v1924 = vsel %vm153, %v1910, 0
    %1926 = vmatprep.subr.mxu0 0.0
    %1927 = vmatpush1.msra.mxu0 %v1911
    %1928 = vmatprep.subr.mxu0 0.0
    %1929 = vmatpush1.msra.mxu0 %v1912
    %1930 = vmatprep.subr.mxu0 0.0
    %1931 = vmatpush1.msra.mxu0 %v1913
    %1932 = vmatprep.subr.mxu0 0.0
    %1933 = vmatpush1.msra.mxu0 %v1914
    %1934 = vmatprep.subr.mxu0 0.0
    %1935 = vmatpush1.msra.mxu0 0.0
    %1936 = vmatprep.subr.mxu0 0.0
    %1937 = vmatpush1.msra.mxu0 0.0
    %1938 = vmatprep.subr.mxu0 0.0
    %1939 = vmatpush1.msra.mxu0 0.0
    %1940 = vmatprep.subr.mxu0 0.0
    %1941 = vmatpush1.msra.mxu0 0.0
    %1942 = vmatprep.subr.mxu0 0.0
    %1943 = vmatpush1.msra.mxu0 0.0
    %1944 = vmatprep.subr.mxu0 0.0
    %1945 = vmatpush1.msra.mxu0 0.0
    %1946 = vmatprep.subr.mxu0 0.0
    %1947 = vmatpush1.msra.mxu0 0.0
    %1948 = vmatprep.subr.mxu0 0.0
    %1949 = vmatpush1.msra.mxu0 0.0
    %1950 = vmatprep.subr.mxu0 0.0
    %1951 = vmatpush1.msra.mxu0 0.0
    %1952 = vmatprep.subr.mxu0 0.0
    %1953 = vmatpush1.msra.mxu0 0.0
    %1954 = vmatprep.subr.mxu0 0.0
    %1955 = vmatpush1.msra.mxu0 0.0
    %1956 = vmatprep.subr.mxu0 0.0
    %1957 = vmatpush1.msra.mxu0 0.0
    %1958 = vmatprep.subr.mxu0 0.0
    %1959 = vmatpush1.msra.mxu0 0.0
    %1960 = vmatprep.subr.mxu0 0.0
    %1961 = vmatpush1.msra.mxu0 0.0
    %1962 = vmatprep.subr.mxu0 0.0
    %1963 = vmatpush1.msra.mxu0 0.0
    %1964 = vmatprep.subr.mxu0 0.0
    %1965 = vmatpush1.msra.mxu0 0.0
    %1966 = vmatprep.subr.mxu0 0.0
    %1967 = vmatpush1.msra.mxu0 0.0
    %1968 = vmatprep.subr.mxu0 0.0
    %1969 = vmatpush1.msra.mxu0 0.0
    %1970 = vmatprep.subr.mxu0 0.0
    %1971 = vmatpush1.msra.mxu0 0.0
    %1972 = vmatprep.subr.mxu0 0.0
    %1973 = vmatpush1.msra.mxu0 0.0
    %1974 = vmatprep.subr.mxu0 0.0
    %1975 = vmatpush1.msra.mxu0 0.0
    %1976 = vmatprep.subr.mxu0 0.0
    %1977 = vmatpush1.msra.mxu0 0.0
    %1978 = vmatprep.subr.mxu0 0.0
    %1979 = vmatpush1.msra.mxu0 0.0
    %1980 = vmatprep.subr.mxu0 0.0
    %1981 = vmatpush1.msra.mxu0 0.0
    %1982 = vmatprep.subr.mxu0 0.0
    %1983 = vmatpush1.msra.mxu0 0.0
    %1984 = vmatprep.subr.mxu0 0.0
    %1985 = vmatpush1.msra.mxu0 0.0
    %1986 = vmatprep.subr.mxu0 0.0
    %1987 = vmatpush1.msra.mxu0 0.0
    %1988 = vmatprep.subr.mxu0 0.0
    %1989 = vmatpush1.msra.mxu0 0.0
    %1990 = vmatprep.mubr.f32.mxu0 0.0
    %1991 = vmatmul.mubr.f32.gmra.mrb[0].mxu0 %v1921
    %v1992 = vpop.f32.mrb[0].mxu0
    %v1993 = vadd.f32 %v1919, %v1992
    %v1994 = vpop.f32.mrb[0].mxu0
    %1995 = vmatprep.mubr.f32.mxu0 0.0
    %1996 = vmatmul.mubr.f32.gmra.mrb[0].mxu0 %v1924
    %v1997 = vpop.f32.mrb[0].mxu0
    %v1998 = vadd.f32 %v1919, %v1997
    %v1999 = vpop.f32.mrb[0].mxu0
    %2000 = vdwg.mxu0
    %v2001 = vsel %vm153, %v1993, -inf
    %2002 = vmax.xlane.f32.xlu0 %v2001
    %v2003 = vpop.xlane.xlu0 %2002
    %v2004 = vsel %vm153, %v1998, -inf
    %2005 = vmax.xlane.f32.xlu0 %v2004
    %v2006 = vpop.xlane.xlu0 %2005
    %v2007 = vsub.f32 %v1993, %v2003
    %v2008 = vsub.f32 %v1998, %v2006
    %v2009 = vmul.f32 %v2007, 1.442695
    %v2010 = vpow.pop %v2009
    %v2011 = vmul.f32 %v2008, 1.442695
    %v2012 = vpow.pop %v2011
    %v2013 = vsel %vm153, %v2010, 0.0
    %2014 = vadd.xlane.f32.xlu0 %v2013
    %v2015 = vpop.xlane.xlu0 %2014
    %v2016 = vsel %vm153, %v2012, 0.0
    %2017 = vadd.xlane.f32.xlu0 %v2016
    %v2018 = vpop.xlane.xlu0 %2017
    %v2019 = vrcp.pop %v2015
    %v2020 = vrcp.pop %v2018
    %v2021 = vmul.f32 %v2015, %v2019
    %v2022 = vmul.f32 %v2018, %v2020
    %v2023 = vsub.f32 2.0, %v2021
    %v2024 = vsub.f32 2.0, %v2022
    %v2025 = vmul.f32 %v2019, %v2023
    %v2026 = vmul.f32 %v2020, %v2024
    %v2027 = vmul.f32 %v2010, %v2025
    %v2028 = vmul.f32 %v2012, %v2026
    %2029 = vst.msk [vmem:[#allocation9] sm:$0xff] %vm153, %v2027
    %2030 = vst.msk [vmem:[#allocation9 + $0x8] sm:$0xff] %vm153, %v2028
    // Predicated region
    $region26: #{tpu_custom_call.1} parent=1 // pred_check
      _
    $region27: #{tpu_custom_call.1} parent=1 // pred_check_branch
      %2032 = sbr.rel (0) target = $region29
    $region28: #{tpu_custom_call.1} parent=1 // pred_region
      %s2034 = ssub.s32 256, 256
      %2035 = vsyncadd [#allocation6], %s2034
      %s2036 = sshll.u32 [#allocation9], 4
      %s2037 = int_to_ptr.vmem [resolvable:$true] %s2036
      %2042 = dma.vmem_to_hbm [thread:$0]  %s2037, 256, %s4, [#allocation6], 128, 128, 8
    $region29: #{tpu_custom_call.1} parent=1 // pred_fallthru
      _
    // Predicated region
    $region30: #{tpu_custom_call.1} parent=1 // pred_check
      _
    $region31: #{tpu_custom_call.1} parent=1 // pred_check_branch
      %2044 = sbr.rel (0) target = $region33
    $region32: #{tpu_custom_call.1} parent=1 // pred_region
      %2045 = dma.done [#allocation6], 256
    $region33: #{tpu_custom_call.1} parent=1 // pred_fallthru
      _
    %2046 = vsyncpa [#allocation5], 1
    %2047 = vsyncpa [#allocation8], 1
    %2048 = vsyncpa [#allocation6], 1

</llo_original>
